<compile_context>
chip_gen: v7x
topology: tpu7x:2x2x1
jax: 0.10.0
libtpu: 0.0.40
codegen_flags: <defaults>
</compile_context>

<pallas_src>
import math

import jax
import jax.numpy as jnp
from jax.experimental import pallas as pl
from jax.experimental.pallas import tpu as pltpu

# ---------------- model dims (small, consistent with the module) -------------
B = 2      # batch
S = 8      # sequence length
D = 32     # d_model ("features")
H = 4      # attention heads
DK = D // H
F = 64     # feed-forward hidden dim
R = B * S  # total rows processed per kernel invocation
EPS = 1e-6
NEG_INF = -1e9

assert D <= F  # packed-vector layout pads D-wide rows up to F lanes


def _layernorm(x, gamma, beta):
    mu = jnp.mean(x, axis=-1, keepdims=True)
    var = jnp.mean((x - mu) ** 2, axis=-1, keepdims=True)
    return (x - mu) * jax.lax.rsqrt(var + EPS) * gamma + beta


def encoder_layer_kernel(keep_ref, x_ref, wqkv_ref, wo_ref, w1_ref, w2_ref,
                         vec_ref, o_ref):
    """Single grid step: the whole (B*S, D) batch end-to-end."""
    x = x_ref[...]                      # (R, D) f32
    keep = keep_ref[...]                # (R, R)  1 = attend (same batch & valid key)

    # packed small vectors: rows [g1, be1, g2, be2, b1, b2] padded to F lanes.
    g1 = vec_ref[0:1, 0:D]
    be1 = vec_ref[1:2, 0:D]
    g2 = vec_ref[2:3, 0:D]
    be2 = vec_ref[3:4, 0:D]
    b1 = vec_ref[4:5, :]                # (1, F)
    b2 = vec_ref[5:6, 0:D]              # (1, D)

    # ---------------- sublayer 1: pre-LN multi-head self-attention ----------
    xn = _layernorm(x, g1, be1)                                          # (R, D)
    # Fused QKV projection; 1/sqrt(DK) is already folded into the Q columns.
    qkv = jnp.dot(xn, wqkv_ref[...], preferred_element_type=jnp.float32)  # (R, 3D)

    # Head-major stacking (H, R, DK) for a single head-batched dot_general.
    q = jnp.stack([qkv[:, h * DK:(h + 1) * DK] for h in range(H)], axis=0)
    k = jnp.stack([qkv[:, D + h * DK:D + (h + 1) * DK] for h in range(H)], axis=0)
    v = jnp.stack([qkv[:, 2 * D + h * DK:2 * D + (h + 1) * DK] for h in range(H)],
                  axis=0)

    # Scores over ALL B*S keys at once; cross-batch / padded keys are masked to
    # -1e9 and underflow to exactly 0 after exp, so results match per-batch
    # attention. (Degenerate all-keys-masked rows are undefined either way.)
    s = jnp.einsum("hqd,hkd->hqk", q, k,
                   preferred_element_type=jnp.float32)                    # (H, R, R)
    s = jnp.where(keep[None, :, :] > 0, s, NEG_INF)
    s = s - jnp.max(s, axis=-1, keepdims=True)
    p = jnp.exp(s)
    p = p * pl.reciprocal(jnp.sum(p, axis=-1, keepdims=True), approx=True)
    ctx = jnp.einsum("hqk,hkd->hqd", p, v,
                     preferred_element_type=jnp.float32)                  # (H, R, DK)
    attn = jnp.concatenate([ctx[h] for h in range(H)], axis=-1)           # (R, D)

    x1 = x + jnp.dot(attn, wo_ref[...], preferred_element_type=jnp.float32)

    # ---------------- sublayer 2: pre-LN feed-forward ------------------------
    xn2 = _layernorm(x1, g2, be2)
    h1 = jnp.dot(xn2, w1_ref[...], preferred_element_type=jnp.float32) + b1
    h1 = jnp.maximum(h1, 0.0)
    ff = jnp.dot(h1, w2_ref[...], preferred_element_type=jnp.float32) + b2

    o_ref[...] = (x1 + ff).astype(o_ref.dtype)


def encoder_layer(x, mask, params):
    """x: (B,S,D) f32, mask: (B,1,S) key mask (1=attend), params: dict."""
    scale = 1.0 / math.sqrt(DK)
    # Fuse QKV and fold the softmax scale into Wq (host-side, free).
    wqkv = jnp.concatenate(
        [params["wq"] * scale, params["wk"], params["wv"]], axis=1)       # (D, 3D)

    # Pack the six small (1,*) vectors into one (6, F) slab (one DMA).
    def pad_f(v):
        return jnp.pad(v, ((0, 0), (0, F - v.shape[1])))
    vecs = jnp.concatenate(
        [pad_f(params["g1"]), pad_f(params["be1"]),
         pad_f(params["g2"]), pad_f(params["be2"]),
         params["b1"], pad_f(params["b2"])], axis=0).astype(jnp.float32)  # (6, F)

    # Combined (B*S, B*S) keep mask: same batch AND key not padded.
    key_keep = mask[:, 0, :].astype(jnp.float32)                          # (B, S)
    same_batch = jnp.eye(B, dtype=jnp.float32)                            # (B, B)
    keep4 = same_batch[:, None, :, None] * key_keep[None, None, :, :]     # (B,1,B,S)
    keep = jnp.broadcast_to(keep4, (B, S, B, S)).reshape(R, R)            # (R, R)

    x2d = x.reshape(R, D)

    grid_spec = pltpu.PrefetchScalarGridSpec(
        num_scalar_prefetch=0,
        grid=(1,),
        in_specs=[
            pl.BlockSpec((R, R), lambda i: (0, 0)),        # keep mask
            pl.BlockSpec((R, D), lambda i: (0, 0)),        # x (flattened rows)
            pl.BlockSpec((D, 3 * D), lambda i: (0, 0)),    # fused Wqkv
            pl.BlockSpec((D, D), lambda i: (0, 0)),        # Wo
            pl.BlockSpec((D, F), lambda i: (0, 0)),        # W1
            pl.BlockSpec((F, D), lambda i: (0, 0)),        # W2
            pl.BlockSpec((6, F), lambda i: (0, 0)),        # packed vectors
        ],
        out_specs=pl.BlockSpec((R, D), lambda i: (0, 0)),
    )

    out2d = pl.pallas_call(
        encoder_layer_kernel,
        out_shape=jax.ShapeDtypeStruct((R, D), jnp.float32),
        grid_spec=grid_spec,
        compiler_params=pltpu.CompilerParams(
            dimension_semantics=("arbitrary",)),
    )(keep, x2d, wqkv, params["wo"], params["w1"], params["w2"], vecs)

    return out2d.reshape(B, S, D)


# --------------------------- pure-JAX reference ------------------------------
def encoder_layer_ref(x, mask, p):
    def ln(z, g, b):
        mu = jnp.mean(z, axis=-1, keepdims=True)
        var = jnp.mean((z - mu) ** 2, axis=-1, keepdims=True)
        return (z - mu) / jnp.sqrt(var + EPS) * g + b

    xn = ln(x, p["g1"], p["be1"])
    q = xn @ p["wq"]; k = xn @ p["wk"]; v = xn @ p["wv"]
    q = q.reshape(B, S, H, DK).transpose(0, 2, 1, 3)
    k = k.reshape(B, S, H, DK).transpose(0, 2, 1, 3)
    v = v.reshape(B, S, H, DK).transpose(0, 2, 1, 3)
    sc = jnp.einsum("bhqd,bhkd->bhqk", q, k) / math.sqrt(DK)
    sc = jnp.where(mask[:, None, :, :] > 0, sc, NEG_INF)
    p_att = jax.nn.softmax(sc, axis=-1)
    att = jnp.einsum("bhqk,bhkd->bhqd", p_att, v).transpose(0, 2, 1, 3).reshape(B, S, D)
    x1 = x + att @ p["wo"]
    xn2 = ln(x1, p["g2"], p["be2"])
    ff = jnp.maximum(xn2 @ p["w1"] + p["b1"], 0.0) @ p["w2"] + p["b2"]
    return x1 + ff


if __name__ == "__main__":
    key = jax.random.PRNGKey(0)
    keys = jax.random.split(key, 10)

    params = {
        "wq": jax.random.normal(keys[0], (D, D), jnp.float32) * 0.05,
        "wk": jax.random.normal(keys[1], (D, D), jnp.float32) * 0.05,
        "wv": jax.random.normal(keys[2], (D, D), jnp.float32) * 0.05,
        "wo": jax.random.normal(keys[3], (D, D), jnp.float32) * 0.05,
        "w1": jax.random.normal(keys[4], (D, F), jnp.float32) * 0.05,
        "b1": jax.random.normal(keys[5], (1, F), jnp.float32) * 0.01,
        "w2": jax.random.normal(keys[6], (F, D), jnp.float32) * 0.05,
        "b2": jax.random.normal(keys[7], (1, D), jnp.float32) * 0.01,
        "g1": jnp.ones((1, D), jnp.float32),
        "be1": jnp.zeros((1, D), jnp.float32),
        "g2": jnp.ones((1, D), jnp.float32),
        "be2": jnp.zeros((1, D), jnp.float32),
    }

    x = jax.random.normal(keys[8], (B, S, D), jnp.float32)
    # encoder_mask: 1 = attend, 0 = padded; pad the last 2 keys of batch 1.
    mask = jnp.ones((B, 1, S), jnp.float32)
    mask = mask.at[1, 0, S - 2:].set(0.0)

    out = encoder_layer(x, mask, params)
    out = jax.block_until_ready(out)

    ref = encoder_layer_ref(x, mask, params)
    assert out.shape == (B, S, D)
    # tolerance loosened slightly vs 1e-4 to cover the approx (EUP) reciprocal
    # used for the softmax denominator.
    assert jnp.allclose(out, ref, atol=2e-3, rtol=2e-3), float(jnp.max(jnp.abs(out - ref)))

    print("KERNEL_OK")
</pallas_src>

<mosaic_0001>
module attributes {stable_mosaic.version = 11 : i64} {
  func.func @encoder_layer_kernel(%arg0: i32, %arg1: memref<16x16xf32, #tpu.memory_space<vmem>>, %arg2: memref<16x32xf32, #tpu.memory_space<vmem>>, %arg3: memref<32x96xf32, #tpu.memory_space<vmem>>, %arg4: memref<32x32xf32, #tpu.memory_space<vmem>>, %arg5: memref<32x64xf32, #tpu.memory_space<vmem>>, %arg6: memref<64x32xf32, #tpu.memory_space<vmem>>, %arg7: memref<6x64xf32, #tpu.memory_space<vmem>>, %arg8: memref<16x32xf32, #tpu.memory_space<vmem>>) attributes {dimension_semantics = [#tpu.dimension_semantics<arbitrary>], iteration_bounds = array<i64: 1>, scalar_prefetch = 0 : i64, scratch_operands = 0 : i64, tpu.core_type = #tpu.core_type<tc>, window_params = [{pipeline_mode = #tpu.pipeline_mode<synchronous>, transform_indices = @transform_0, window_bounds = array<i64: 16, 16>}, {pipeline_mode = #tpu.pipeline_mode<synchronous>, transform_indices = @transform_1, window_bounds = array<i64: 16, 32>}, {pipeline_mode = #tpu.pipeline_mode<synchronous>, transform_indices = @transform_2, window_bounds = array<i64: 32, 96>}, {pipeline_mode = #tpu.pipeline_mode<synchronous>, transform_indices = @transform_3, window_bounds = array<i64: 32, 32>}, {pipeline_mode = #tpu.pipeline_mode<synchronous>, transform_indices = @transform_4, window_bounds = array<i64: 32, 64>}, {pipeline_mode = #tpu.pipeline_mode<synchronous>, transform_indices = @transform_5, window_bounds = array<i64: 64, 32>}, {pipeline_mode = #tpu.pipeline_mode<synchronous>, transform_indices = @transform_6, window_bounds = array<i64: 6, 64>}, {pipeline_mode = #tpu.pipeline_mode<synchronous>, transform_indices = @transform_7, window_bounds = array<i64: 16, 32>}]} {
    %c0 = arith.constant 0 : index
    %c0_0 = arith.constant 0 : index
    %0 = vector.load %arg2[%c0, %c0_0] : memref<16x32xf32, #tpu.memory_space<vmem>>, vector<16x32xf32>
    %c0_1 = arith.constant 0 : index
    %c0_2 = arith.constant 0 : index
    %1 = vector.load %arg1[%c0_1, %c0_2] : memref<16x16xf32, #tpu.memory_space<vmem>>, vector<16x16xf32>
    %c0_3 = arith.constant 0 : index
    %c0_4 = arith.constant 0 : index
    %2 = vector.load %arg7[%c0_3, %c0_4] : memref<6x64xf32, #tpu.memory_space<vmem>>, vector<1x32xf32>
    %c1 = arith.constant 1 : index
    %c0_5 = arith.constant 0 : index
    %3 = vector.load %arg7[%c1, %c0_5] : memref<6x64xf32, #tpu.memory_space<vmem>>, vector<1x32xf32>
    %c2 = arith.constant 2 : index
    %c0_6 = arith.constant 0 : index
    %4 = vector.load %arg7[%c2, %c0_6] : memref<6x64xf32, #tpu.memory_space<vmem>>, vector<1x32xf32>
    %c3 = arith.constant 3 : index
    %c0_7 = arith.constant 0 : index
    %5 = vector.load %arg7[%c3, %c0_7] : memref<6x64xf32, #tpu.memory_space<vmem>>, vector<1x32xf32>
    %c4 = arith.constant 4 : index
    %c0_8 = arith.constant 0 : index
    %6 = vector.load %arg7[%c4, %c0_8] : memref<6x64xf32, #tpu.memory_space<vmem>>, vector<1x64xf32>
    %c5 = arith.constant 5 : index
    %c0_9 = arith.constant 0 : index
    %7 = vector.load %arg7[%c5, %c0_9] : memref<6x64xf32, #tpu.memory_space<vmem>>, vector<1x32xf32>
    %cst = arith.constant dense<0.000000e+00> : vector<16xf32>
    %8 = vector.multi_reduction <add>, %0, %cst [1] : vector<16x32xf32> to vector<16xf32>
    %9 = vector.shape_cast %8 : vector<16xf32> to vector<16x1xf32>
    %cst_10 = arith.constant 3.200000e+01 : f32
    %10 = vector.broadcast %cst_10 : f32 to vector<16x1xf32>
    %11 = arith.divf %9, %10 : vector<16x1xf32>
    %12 = vector.broadcast %11 : vector<16x1xf32> to vector<16x32xf32>
    %13 = arith.subf %0, %12 : vector<16x32xf32>
    %14 = arith.mulf %13, %13 : vector<16x32xf32>
    %cst_11 = arith.constant dense<0.000000e+00> : vector<16xf32>
    %15 = vector.multi_reduction <add>, %14, %cst_11 [1] : vector<16x32xf32> to vector<16xf32>
    %16 = vector.shape_cast %15 : vector<16xf32> to vector<16x1xf32>
    %cst_12 = arith.constant 3.200000e+01 : f32
    %17 = vector.broadcast %cst_12 : f32 to vector<16x1xf32>
    %18 = arith.divf %16, %17 : vector<16x1xf32>
    %19 = vector.broadcast %11 : vector<16x1xf32> to vector<16x32xf32>
    %20 = arith.subf %0, %19 : vector<16x32xf32>
    %cst_13 = arith.constant 9.99999997E-7 : f32
    %21 = vector.broadcast %cst_13 : f32 to vector<16x1xf32>
    %22 = arith.addf %18, %21 : vector<16x1xf32>
    %23 = math.rsqrt %22 : vector<16x1xf32>
    %24 = vector.broadcast %23 : vector<16x1xf32> to vector<16x32xf32>
    %25 = arith.mulf %20, %24 : vector<16x32xf32>
    %26 = vector.broadcast %2 : vector<1x32xf32> to vector<16x32xf32>
    %27 = arith.mulf %25, %26 : vector<16x32xf32>
    %28 = vector.broadcast %3 : vector<1x32xf32> to vector<16x32xf32>
    %29 = arith.addf %27, %28 : vector<16x32xf32>
    %c0_14 = arith.constant 0 : index
    %c0_15 = arith.constant 0 : index
    %30 = vector.load %arg3[%c0_14, %c0_15] : memref<32x96xf32, #tpu.memory_space<vmem>>, vector<32x96xf32>
    %cst_16 = arith.constant dense<0.000000e+00> : vector<16x96xf32>
    %31 = tpu.matmul %29, %30, %cst_16 {dimension_numbers = #tpu.dot_dimension_numbers<[1], [0], [0], [1], [0, 0, 1, 1], [], []>} : vector<16x32xf32>, vector<32x96xf32>, vector<16x96xf32> -> vector<16x96xf32>
    %32 = vector.extract_strided_slice %31 {offsets = [0, 0], sizes = [16, 8], strides = [1, 1]} : vector<16x96xf32> to vector<16x8xf32>
    %33 = vector.extract_strided_slice %31 {offsets = [0, 8], sizes = [16, 8], strides = [1, 1]} : vector<16x96xf32> to vector<16x8xf32>
    %34 = vector.extract_strided_slice %31 {offsets = [0, 16], sizes = [16, 8], strides = [1, 1]} : vector<16x96xf32> to vector<16x8xf32>
    %35 = vector.extract_strided_slice %31 {offsets = [0, 24], sizes = [16, 8], strides = [1, 1]} : vector<16x96xf32> to vector<16x8xf32>
    %36 = vector.shape_cast %32 : vector<16x8xf32> to vector<1x16x8xf32>
    %37 = vector.shape_cast %33 : vector<16x8xf32> to vector<1x16x8xf32>
    %38 = vector.shape_cast %34 : vector<16x8xf32> to vector<1x16x8xf32>
    %39 = vector.shape_cast %35 : vector<16x8xf32> to vector<1x16x8xf32>
    %40 = tpu.concatenate %36, %37, %38, %39 in 0 : vector<1x16x8xf32>, vector<1x16x8xf32>, vector<1x16x8xf32>, vector<1x16x8xf32> -> vector<4x16x8xf32>
    %41 = vector.extract_strided_slice %31 {offsets = [0, 32], sizes = [16, 8], strides = [1, 1]} : vector<16x96xf32> to vector<16x8xf32>
    %42 = vector.extract_strided_slice %31 {offsets = [0, 40], sizes = [16, 8], strides = [1, 1]} : vector<16x96xf32> to vector<16x8xf32>
    %43 = vector.extract_strided_slice %31 {offsets = [0, 48], sizes = [16, 8], strides = [1, 1]} : vector<16x96xf32> to vector<16x8xf32>
    %44 = vector.extract_strided_slice %31 {offsets = [0, 56], sizes = [16, 8], strides = [1, 1]} : vector<16x96xf32> to vector<16x8xf32>
    %45 = vector.shape_cast %41 : vector<16x8xf32> to vector<1x16x8xf32>
    %46 = vector.shape_cast %42 : vector<16x8xf32> to vector<1x16x8xf32>
    %47 = vector.shape_cast %43 : vector<16x8xf32> to vector<1x16x8xf32>
    %48 = vector.shape_cast %44 : vector<16x8xf32> to vector<1x16x8xf32>
    %49 = tpu.concatenate %45, %46, %47, %48 in 0 : vector<1x16x8xf32>, vector<1x16x8xf32>, vector<1x16x8xf32>, vector<1x16x8xf32> -> vector<4x16x8xf32>
    %50 = vector.extract_strided_slice %31 {offsets = [0, 64], sizes = [16, 8], strides = [1, 1]} : vector<16x96xf32> to vector<16x8xf32>
    %51 = vector.extract_strided_slice %31 {offsets = [0, 72], sizes = [16, 8], strides = [1, 1]} : vector<16x96xf32> to vector<16x8xf32>
    %52 = vector.extract_strided_slice %31 {offsets = [0, 80], sizes = [16, 8], strides = [1, 1]} : vector<16x96xf32> to vector<16x8xf32>
    %53 = vector.extract_strided_slice %31 {offsets = [0, 88], sizes = [16, 8], strides = [1, 1]} : vector<16x96xf32> to vector<16x8xf32>
    %54 = vector.shape_cast %50 : vector<16x8xf32> to vector<1x16x8xf32>
    %55 = vector.shape_cast %51 : vector<16x8xf32> to vector<1x16x8xf32>
    %56 = vector.shape_cast %52 : vector<16x8xf32> to vector<1x16x8xf32>
    %57 = vector.shape_cast %53 : vector<16x8xf32> to vector<1x16x8xf32>
    %58 = tpu.concatenate %54, %55, %56, %57 in 0 : vector<1x16x8xf32>, vector<1x16x8xf32>, vector<1x16x8xf32>, vector<1x16x8xf32> -> vector<4x16x8xf32>
    "tpu.trace_start"() <{level = 10 : i32, message = "hqd,hkd->hqk"}> : () -> ()
    %cst_17 = arith.constant dense<0.000000e+00> : vector<4x16x16xf32>
    %59 = tpu.matmul %40, %49, %cst_17 {dimension_numbers = #tpu.dot_dimension_numbers<[2], [2], [1], [1], [0, 0, 0, 1, 1, 1], [0], [0]>} : vector<4x16x8xf32>, vector<4x16x8xf32>, vector<4x16x16xf32> -> vector<4x16x16xf32>
    "tpu.trace_stop"() : () -> ()
    %60 = vector.shape_cast %1 : vector<16x16xf32> to vector<1x16x16xf32>
    %cst_18 = arith.constant 0.000000e+00 : f32
    %61 = vector.broadcast %cst_18 : f32 to vector<1x16x16xf32>
    %62 = arith.cmpf ogt, %60, %61 : vector<1x16x16xf32>
    %cst_19 = arith.constant -1.000000e+09 : f32
    %63 = vector.shape_cast %62 : vector<1x16x16xi1> to vector<1x16x16xi1>
    %64 = vector.broadcast %63 : vector<1x16x16xi1> to vector<4x16x16xi1>
    %65 = vector.broadcast %cst_19 : f32 to vector<4x16x16xf32>
    %66 = arith.select %64, %59, %65 : vector<4x16x16xi1>, vector<4x16x16xf32>
    %cst_20 = arith.constant dense<0xFF800000> : vector<4x16xf32>
    %67 = vector.multi_reduction <maximumf>, %66, %cst_20 [2] : vector<4x16x16xf32> to vector<4x16xf32>
    %68 = vector.shape_cast %67 : vector<4x16xf32> to vector<4x16x1xf32>
    %69 = vector.broadcast %68 : vector<4x16x1xf32> to vector<4x16x16xf32>
    %70 = arith.subf %66, %69 : vector<4x16x16xf32>
    %71 = math.exp %70 : vector<4x16x16xf32>
    %cst_21 = arith.constant dense<0.000000e+00> : vector<4x16xf32>
    %72 = vector.multi_reduction <add>, %71, %cst_21 [2] : vector<4x16x16xf32> to vector<4x16xf32>
    %73 = vector.shape_cast %72 : vector<4x16xf32> to vector<4x16x1xf32>
    %74 = tpu.reciprocal %73 {approx = true} : vector<4x16x1xf32> -> vector<4x16x1xf32>
    %75 = vector.broadcast %74 : vector<4x16x1xf32> to vector<4x16x16xf32>
    %76 = arith.mulf %71, %75 : vector<4x16x16xf32>
    "tpu.trace_start"() <{level = 10 : i32, message = "hqk,hkd->hqd"}> : () -> ()
    %cst_22 = arith.constant dense<0.000000e+00> : vector<4x16x8xf32>
    %77 = tpu.matmul %76, %58, %cst_22 {dimension_numbers = #tpu.dot_dimension_numbers<[2], [1], [1], [2], [0, 0, 0, 1, 1, 2], [0], [0]>} : vector<4x16x16xf32>, vector<4x16x8xf32>, vector<4x16x8xf32> -> vector<4x16x8xf32>
    "tpu.trace_stop"() : () -> ()
    %78 = vector.extract_strided_slice %77 {offsets = [0, 0, 0], sizes = [1, 16, 8], strides = [1, 1, 1]} : vector<4x16x8xf32> to vector<1x16x8xf32>
    %79 = vector.shape_cast %78 : vector<1x16x8xf32> to vector<16x8xf32>
    %80 = vector.extract_strided_slice %77 {offsets = [1, 0, 0], sizes = [1, 16, 8], strides = [1, 1, 1]} : vector<4x16x8xf32> to vector<1x16x8xf32>
    %81 = vector.shape_cast %80 : vector<1x16x8xf32> to vector<16x8xf32>
    %82 = vector.extract_strided_slice %77 {offsets = [2, 0, 0], sizes = [1, 16, 8], strides = [1, 1, 1]} : vector<4x16x8xf32> to vector<1x16x8xf32>
    %83 = vector.shape_cast %82 : vector<1x16x8xf32> to vector<16x8xf32>
    %84 = vector.extract_strided_slice %77 {offsets = [3, 0, 0], sizes = [1, 16, 8], strides = [1, 1, 1]} : vector<4x16x8xf32> to vector<1x16x8xf32>
    %85 = vector.shape_cast %84 : vector<1x16x8xf32> to vector<16x8xf32>
    %86 = tpu.concatenate %79, %81, %83, %85 in 1 : vector<16x8xf32>, vector<16x8xf32>, vector<16x8xf32>, vector<16x8xf32> -> vector<16x32xf32>
    %c0_23 = arith.constant 0 : index
    %c0_24 = arith.constant 0 : index
    %87 = vector.load %arg4[%c0_23, %c0_24] : memref<32x32xf32, #tpu.memory_space<vmem>>, vector<32x32xf32>
    %cst_25 = arith.constant dense<0.000000e+00> : vector<16x32xf32>
    %88 = tpu.matmul %86, %87, %cst_25 {dimension_numbers = #tpu.dot_dimension_numbers<[1], [0], [0], [1], [0, 0, 1, 1], [], []>} : vector<16x32xf32>, vector<32x32xf32>, vector<16x32xf32> -> vector<16x32xf32>
    %89 = arith.addf %0, %88 : vector<16x32xf32>
    %cst_26 = arith.constant dense<0.000000e+00> : vector<16xf32>
    %90 = vector.multi_reduction <add>, %89, %cst_26 [1] : vector<16x32xf32> to vector<16xf32>
    %91 = vector.shape_cast %90 : vector<16xf32> to vector<16x1xf32>
    %cst_27 = arith.constant 3.200000e+01 : f32
    %92 = vector.broadcast %cst_27 : f32 to vector<16x1xf32>
    %93 = arith.divf %91, %92 : vector<16x1xf32>
    %94 = vector.broadcast %93 : vector<16x1xf32> to vector<16x32xf32>
    %95 = arith.subf %89, %94 : vector<16x32xf32>
    %96 = arith.mulf %95, %95 : vector<16x32xf32>
    %cst_28 = arith.constant dense<0.000000e+00> : vector<16xf32>
    %97 = vector.multi_reduction <add>, %96, %cst_28 [1] : vector<16x32xf32> to vector<16xf32>
    %98 = vector.shape_cast %97 : vector<16xf32> to vector<16x1xf32>
    %cst_29 = arith.constant 3.200000e+01 : f32
    %99 = vector.broadcast %cst_29 : f32 to vector<16x1xf32>
    %100 = arith.divf %98, %99 : vector<16x1xf32>
    %101 = vector.broadcast %93 : vector<16x1xf32> to vector<16x32xf32>
    %102 = arith.subf %89, %101 : vector<16x32xf32>
    %cst_30 = arith.constant 9.99999997E-7 : f32
    %103 = vector.broadcast %cst_30 : f32 to vector<16x1xf32>
    %104 = arith.addf %100, %103 : vector<16x1xf32>
    %105 = math.rsqrt %104 : vector<16x1xf32>
    %106 = vector.broadcast %105 : vector<16x1xf32> to vector<16x32xf32>
    %107 = arith.mulf %102, %106 : vector<16x32xf32>
    %108 = vector.broadcast %4 : vector<1x32xf32> to vector<16x32xf32>
    %109 = arith.mulf %107, %108 : vector<16x32xf32>
    %110 = vector.broadcast %5 : vector<1x32xf32> to vector<16x32xf32>
    %111 = arith.addf %109, %110 : vector<16x32xf32>
    %c0_31 = arith.constant 0 : index
    %c0_32 = arith.constant 0 : index
    %112 = vector.load %arg5[%c0_31, %c0_32] : memref<32x64xf32, #tpu.memory_space<vmem>>, vector<32x64xf32>
    %cst_33 = arith.constant dense<0.000000e+00> : vector<16x64xf32>
    %113 = tpu.matmul %111, %112, %cst_33 {dimension_numbers = #tpu.dot_dimension_numbers<[1], [0], [0], [1], [0, 0, 1, 1], [], []>} : vector<16x32xf32>, vector<32x64xf32>, vector<16x64xf32> -> vector<16x64xf32>
    %114 = vector.broadcast %6 : vector<1x64xf32> to vector<16x64xf32>
    %115 = arith.addf %113, %114 : vector<16x64xf32>
    %cst_34 = arith.constant 0.000000e+00 : f32
    %116 = vector.broadcast %cst_34 : f32 to vector<16x64xf32>
    %117 = arith.maximumf %115, %116 : vector<16x64xf32>
    %c0_35 = arith.constant 0 : index
    %c0_36 = arith.constant 0 : index
    %118 = vector.load %arg6[%c0_35, %c0_36] : memref<64x32xf32, #tpu.memory_space<vmem>>, vector<64x32xf32>
    %cst_37 = arith.constant dense<0.000000e+00> : vector<16x32xf32>
    %119 = tpu.matmul %117, %118, %cst_37 {dimension_numbers = #tpu.dot_dimension_numbers<[1], [0], [0], [1], [0, 0, 1, 1], [], []>} : vector<16x64xf32>, vector<64x32xf32>, vector<16x32xf32> -> vector<16x32xf32>
    %120 = vector.broadcast %7 : vector<1x32xf32> to vector<16x32xf32>
    %121 = arith.addf %119, %120 : vector<16x32xf32>
    %122 = arith.addf %89, %121 : vector<16x32xf32>
    %c0_38 = arith.constant 0 : index
    %c0_39 = arith.constant 0 : index
    %123 = vector.load %arg8[%c0_38, %c0_39] : memref<16x32xf32, #tpu.memory_space<vmem>>, vector<16x32xf32>
    tpu.vector_store %arg8[%c0_38, %c0_39], %122 {strides = array<i32>} : memref<16x32xf32, #tpu.memory_space<vmem>>, vector<16x32xf32>,
    return
  }
  func.func @transform_0(%arg0: i32) -> (i32, i32) {
    %c0_i32 = arith.constant 0 : i32
    %c0_i32_0 = arith.constant 0 : i32
    %c0_i32_1 = arith.constant 0 : i32
    return %c0_i32, %c0_i32_0 : i32, i32
  }
  func.func @transform_1(%arg0: i32) -> (i32, i32) {
    %c0_i32 = arith.constant 0 : i32
    %c0_i32_0 = arith.constant 0 : i32
    %c0_i32_1 = arith.constant 0 : i32
    return %c0_i32, %c0_i32_0 : i32, i32
  }
  func.func @transform_2(%arg0: i32) -> (i32, i32) {
    %c0_i32 = arith.constant 0 : i32
    %c0_i32_0 = arith.constant 0 : i32
    %c0_i32_1 = arith.constant 0 : i32
    return %c0_i32, %c0_i32_0 : i32, i32
  }
  func.func @transform_3(%arg0: i32) -> (i32, i32) {
    %c0_i32 = arith.constant 0 : i32
    %c0_i32_0 = arith.constant 0 : i32
    %c0_i32_1 = arith.constant 0 : i32
    return %c0_i32, %c0_i32_0 : i32, i32
  }
  func.func @transform_4(%arg0: i32) -> (i32, i32) {
    %c0_i32 = arith.constant 0 : i32
    %c0_i32_0 = arith.constant 0 : i32
    %c0_i32_1 = arith.constant 0 : i32
    return %c0_i32, %c0_i32_0 : i32, i32
  }
  func.func @transform_5(%arg0: i32) -> (i32, i32) {
    %c0_i32 = arith.constant 0 : i32
    %c0_i32_0 = arith.constant 0 : i32
    %c0_i32_1 = arith.constant 0 : i32
    return %c0_i32, %c0_i32_0 : i32, i32
  }
  func.func @transform_6(%arg0: i32) -> (i32, i32) {
    %c0_i32 = arith.constant 0 : i32
    %c0_i32_0 = arith.constant 0 : i32
    %c0_i32_1 = arith.constant 0 : i32
    return %c0_i32, %c0_i32_0 : i32, i32
  }
  func.func @transform_7(%arg0: i32) -> (i32, i32) {
    %c0_i32 = arith.constant 0 : i32
    %c0_i32_0 = arith.constant 0 : i32
    %c0_i32_1 = arith.constant 0 : i32
    return %c0_i32, %c0_i32_0 : i32, i32
  }
}

</mosaic_0001>

<llo_original>
// kernel: tpu_custom_call.1
$region0: #{tpu_custom_call.1}
  #allocation0 [shape = 'u32[]', space=smem, size = 0x4, offset = 0x4, fixed_abs, tag = 'smem constant byte address 0x4 - core index']
  #allocation1 [shape = 'u32[144,128]{1,0:T(1,128)}', space=vmem, size = 0x12000, scoped, tag = 'internal scratch']
  %s0 = inlined_call_operand.hbm [shape: f32[16,16], index: 0, kind: input, shape index: {}]
  %s1 = inlined_call_operand.hbm [shape: f32[16,32], index: 1, kind: input, shape index: {}]
  %s2 = inlined_call_operand.vmem [shape: f32[32,96], index: 2, kind: input, shape index: {}]
  %s3 = inlined_call_operand.vmem [shape: f32[32,32], index: 3, kind: input, shape index: {}]
  %s4 = inlined_call_operand.vmem [shape: f32[32,64], index: 4, kind: input, shape index: {}]
  %s5 = inlined_call_operand.vmem [shape: f32[64,32], index: 5, kind: input, shape index: {}]
  %s6 = inlined_call_operand.vmem [shape: f32[6,64], index: 6, kind: input, shape index: {}]
  %s7 = inlined_call_operand.hbm [shape: f32[16,32], index: 7, kind: output, shape index: {}]
  %s8 = sld [smem:[#allocation0]]
  $region46: #{tpu_custom_call.1} parent=0
    _
  %s10 = ssub.s32 1, %s8
  %s11 = scalar_select 0, %s10, %s8
  $region1: #{tpu_custom_call.1} parent=0
    #allocation2 [shape = 'u8[8192]{0}', space=vmem, size = 0x2000, scoped, tag = 'input window, operand 0, single buffered']
    #allocation3 [shape = 's32[1]{0}', space=sflag, size = 0x4, scoped, tag = 'scoped memory for tpu_custom_call.1']
    #allocation4 [shape = 's32[1]{0}', space=sflag, size = 0x4, scoped, tag = 'scoped memory for tpu_custom_call.1']
    #allocation5 [shape = 'u8[8192]{0}', space=vmem, size = 0x2000, scoped, tag = 'input window, operand 1, single buffered']
    #allocation6 [shape = 's32[1]{0}', space=sflag, size = 0x4, scoped, tag = 'scoped memory for tpu_custom_call.1']
    #allocation7 [shape = 'u8[8192]{0}', space=vmem, size = 0x2000, scoped, tag = 'output window, operand 0, single buffered']
    %12 = vsyncpa [#allocation3], 0
    %13 = vsyncpa [#allocation6], 0
    %14 = vsyncpa [#allocation4], 0
    // Predicated region
    $region2: #{tpu_custom_call.1} parent=1 // pred_check
      _
    $region3: #{tpu_custom_call.1} parent=1 // pred_check_branch
      %16 = sbr.rel (0) target = $region5
    $region4: #{tpu_custom_call.1} parent=1 // pred_region
      %s18 = ssub.s32 256, 256
      %19 = vsyncadd [#allocation3], %s18
      %s20 = sshll.u32 [#allocation2], 4
      %s21 = int_to_ptr.vmem [resolvable:$true] %s20
      %26 = dma.hbm_to_vmem [thread:$0]  %s0, 256, %s21, [#allocation3], 128, 128, 8
    $region5: #{tpu_custom_call.1} parent=1 // pred_fallthru
      _
    // Predicated region
    $region6: #{tpu_custom_call.1} parent=1 // pred_check
      _
    $region7: #{tpu_custom_call.1} parent=1 // pred_check_branch
      %28 = sbr.rel (0) target = $region9
    $region8: #{tpu_custom_call.1} parent=1 // pred_region
      %s30 = ssub.s32 256, 256
      %31 = vsyncadd [#allocation6], %s30
      %s32 = sshll.u32 [#allocation5], 4
      %s33 = int_to_ptr.vmem [resolvable:$true] %s32
      %38 = dma.hbm_to_vmem [thread:$0]  %s1, 256, %s33, [#allocation6], 128, 128, 8
    $region9: #{tpu_custom_call.1} parent=1 // pred_fallthru
      _
    // Predicated region
    $region10: #{tpu_custom_call.1} parent=1 // pred_check
      _
    $region11: #{tpu_custom_call.1} parent=1 // pred_check_branch
      %40 = sbr.rel (0) target = $region13
    $region12: #{tpu_custom_call.1} parent=1 // pred_region
      _
    $region13: #{tpu_custom_call.1} parent=1 // pred_fallthru
      _
    // Predicated region
    $region14: #{tpu_custom_call.1} parent=1 // pred_check
      _
    $region15: #{tpu_custom_call.1} parent=1 // pred_check_branch
      %42 = sbr.rel (0) target = $region17
    $region16: #{tpu_custom_call.1} parent=1 // pred_region
      _
    $region17: #{tpu_custom_call.1} parent=1 // pred_fallthru
      _
    // Predicated region
    $region18: #{tpu_custom_call.1} parent=1 // pred_check
      _
    $region19: #{tpu_custom_call.1} parent=1 // pred_check_branch
      %44 = sbr.rel (0) target = $region21
    $region20: #{tpu_custom_call.1} parent=1 // pred_region
      _
    $region21: #{tpu_custom_call.1} parent=1 // pred_fallthru
      _
    // Predicated region
    $region22: #{tpu_custom_call.1} parent=1 // pred_check
      _
    $region23: #{tpu_custom_call.1} parent=1 // pred_check_branch
      %46 = sbr.rel (0) target = $region25
    $region24: #{tpu_custom_call.1} parent=1 // pred_region
      _
    $region25: #{tpu_custom_call.1} parent=1 // pred_fallthru
      _
    // Predicated region
    $region26: #{tpu_custom_call.1} parent=1 // pred_check
      _
    $region27: #{tpu_custom_call.1} parent=1 // pred_check_branch
      %48 = sbr.rel (0) target = $region29
    $region28: #{tpu_custom_call.1} parent=1 // pred_region
      _
    $region29: #{tpu_custom_call.1} parent=1 // pred_fallthru
      _
    // Predicated region
    $region30: #{tpu_custom_call.1} parent=1 // pred_check
      _
    $region31: #{tpu_custom_call.1} parent=1 // pred_check_branch
      %50 = sbr.rel (0) target = $region33
    $region32: #{tpu_custom_call.1} parent=1 // pred_region
      %51 = dma.done [#allocation3], 256
    $region33: #{tpu_custom_call.1} parent=1 // pred_fallthru
      _
    // Predicated region
    $region34: #{tpu_custom_call.1} parent=1 // pred_check
      _
    $region35: #{tpu_custom_call.1} parent=1 // pred_check_branch
      %53 = sbr.rel (0) target = $region37
    $region36: #{tpu_custom_call.1} parent=1 // pred_region
      %54 = dma.done [#allocation6], 256
    $region37: #{tpu_custom_call.1} parent=1 // pred_fallthru
      _
    %v55 = vld [vmem:[#allocation5] sm:$0xff]
    %v56 = vld [vmem:[#allocation5 + $0x8] sm:$0xff]
    %v57 = vld [vmem:[#allocation2] sm:$0xff]
    %v58 = vld [vmem:[#allocation2 + $0x8] sm:$0xff]
    %v59 = vld [vmem:[%s6] sm:$0x1]
    %v60 = vld [vmem:[%s6 + $0x1] sm:$0x1]
    %v61 = vld [vmem:[%s6 + $0x2] sm:$0x1]
    %v62 = vld [vmem:[%s6 + $0x3] sm:$0x1]
    %v63 = vld [vmem:[%s6 + $0x4] sm:$0x1]
    %v64 = vld [vmem:[%s6 + $0x5] sm:$0x1]
    %vm65 = vcmask 261120
    %v66 = vsel %vm65, %v55, 0.0
    %67 = vadd.xlane.f32.xlu0 %v66
    %v68 = vpop.xlane.xlu0 %67
    %v69 = vsel %vm65, %v56, 0.0
    %70 = vadd.xlane.f32.xlu0 %v69
    %v71 = vpop.xlane.xlu0 %70
    %v72 = vrcp.pop 32.0
    %v73 = vmul.f32 %v68, %v72
    %v74 = vmul.f32 %v71, %v72
    %v75 = vsub.f32 %v55, %v73
    %v76 = vsub.f32 %v56, %v74
    %v77 = vmul.f32 %v75, %v75
    %v78 = vmul.f32 %v76, %v76
    %v79 = vsel %vm65, %v77, 0.0
    %80 = vadd.xlane.f32.xlu0 %v79
    %v81 = vpop.xlane.xlu0 %80
    %v82 = vsel %vm65, %v78, 0.0
    %83 = vadd.xlane.f32.xlu0 %v82
    %v84 = vpop.xlane.xlu0 %83
    %v85 = vmul.f32 %v81, %v72
    %v86 = vmul.f32 %v84, %v72
    %v87 = vadd.f32 %v85, 1e-06
    %v88 = vadd.f32 %v86, 1e-06
    %v89 = vrsqrt.pop %v87
    %v90 = vrsqrt.pop %v88
    %v91 = vmul.f32 %v75, %v89
    %v92 = vmul.f32 %v76, %v90
    %v93 = vlaneseq
    %v94 = vshrl.u32 %v93, 7
    %v95 = vsub.s32 0, %v94
    %v96 = vrot.slane %v59, %v95
    %v97 = vmul.f32 %v91, %v96
    %v98 = vmul.f32 %v92, %v96
    %v99 = vlaneseq
    %v100 = vshrl.u32 %v99, 7
    %v101 = vsub.s32 0, %v100
    %v102 = vrot.slane %v60, %v101
    %v103 = vadd.f32 %v97, %v102
    %v104 = vadd.f32 %v98, %v102
    %v105 = vld [vmem:[%s2] sm:$0xff]
    %v106 = vld [vmem:[%s2 + $0x8] sm:$0xff]
    %v107 = vld [vmem:[%s2 + $0x10] sm:$0xff]
    %v108 = vld [vmem:[%s2 + $0x18] sm:$0xff]
    %v110 = vsel %vm65, %v103, 0
    %v113 = vsel %vm65, %v104, 0
    %115 = vmatprep.subr.mxu0 0.0
    %116 = vmatpush1.msra.mxu0 %v105
    %117 = vmatprep.subr.mxu0 0.0
    %118 = vmatpush1.msra.mxu0 %v106
    %119 = vmatprep.subr.mxu0 0.0
    %120 = vmatpush1.msra.mxu0 %v107
    %121 = vmatprep.subr.mxu0 0.0
    %122 = vmatpush1.msra.mxu0 %v108
    %123 = vmatprep.subr.mxu0 0.0
    %124 = vmatpush1.msra.mxu0 0.0
    %125 = vmatprep.subr.mxu0 0.0
    %126 = vmatpush1.msra.mxu0 0.0
    %127 = vmatprep.subr.mxu0 0.0
    %128 = vmatpush1.msra.mxu0 0.0
    %129 = vmatprep.subr.mxu0 0.0
    %130 = vmatpush1.msra.mxu0 0.0
    %131 = vmatprep.subr.mxu0 0.0
    %132 = vmatpush1.msra.mxu0 0.0
    %133 = vmatprep.subr.mxu0 0.0
    %134 = vmatpush1.msra.mxu0 0.0
    %135 = vmatprep.subr.mxu0 0.0
    %136 = vmatpush1.msra.mxu0 0.0
    %137 = vmatprep.subr.mxu0 0.0
    %138 = vmatpush1.msra.mxu0 0.0
    %139 = vmatprep.subr.mxu0 0.0
    %140 = vmatpush1.msra.mxu0 0.0
    %141 = vmatprep.subr.mxu0 0.0
    %142 = vmatpush1.msra.mxu0 0.0
    %143 = vmatprep.subr.mxu0 0.0
    %144 = vmatpush1.msra.mxu0 0.0
    %145 = vmatprep.subr.mxu0 0.0
    %146 = vmatpush1.msra.mxu0 0.0
    %147 = vmatprep.subr.mxu0 0.0
    %148 = vmatpush1.msra.mxu0 0.0
    %149 = vmatprep.subr.mxu0 0.0
    %150 = vmatpush1.msra.mxu0 0.0
    %151 = vmatprep.subr.mxu0 0.0
    %152 = vmatpush1.msra.mxu0 0.0
    %153 = vmatprep.subr.mxu0 0.0
    %154 = vmatpush1.msra.mxu0 0.0
    %155 = vmatprep.subr.mxu0 0.0
    %156 = vmatpush1.msra.mxu0 0.0
    %157 = vmatprep.subr.mxu0 0.0
    %158 = vmatpush1.msra.mxu0 0.0
    %159 = vmatprep.subr.mxu0 0.0
    %160 = vmatpush1.msra.mxu0 0.0
    %161 = vmatprep.subr.mxu0 0.0
    %162 = vmatpush1.msra.mxu0 0.0
    %163 = vmatprep.subr.mxu0 0.0
    %164 = vmatpush1.msra.mxu0 0.0
    %165 = vmatprep.subr.mxu0 0.0
    %166 = vmatpush1.msra.mxu0 0.0
    %167 = vmatprep.subr.mxu0 0.0
    %168 = vmatpush1.msra.mxu0 0.0
    %169 = vmatprep.subr.mxu0 0.0
    %170 = vmatpush1.msra.mxu0 0.0
    %171 = vmatprep.subr.mxu0 0.0
    %172 = vmatpush1.msra.mxu0 0.0
    %173 = vmatprep.subr.mxu0 0.0
    %174 = vmatpush1.msra.mxu0 0.0
    %175 = vmatprep.subr.mxu0 0.0
    %176 = vmatpush1.msra.mxu0 0.0
    %177 = vmatprep.subr.mxu0 0.0
    %178 = vmatpush1.msra.mxu0 0.0
    %179 = vmatprep.mubr.f32.mxu0 0.0
    %180 = vmatmul.mubr.f32.gmra.mrb[0].mxu0 %v110
    %v181 = vpop.f32.mrb[0].mxu0
    %v182 = vadd.f32 0.0, %v181
    %v183 = vpop.f32.mrb[0].mxu0
    %184 = vmatprep.mubr.f32.mxu0 0.0
    %185 = vmatmul.mubr.f32.gmra.mrb[0].mxu0 %v113
    %v186 = vpop.f32.mrb[0].mxu0
    %v187 = vadd.f32 0.0, %v186
    %v188 = vpop.f32.mrb[0].mxu0
    %189 = vdwg.mxu0
    %192 = vrot.lane.b32.xlu0 %v182, 120
    %v193 = vpop.permute.xlu0 %192
    %194 = vrot.lane.b32.xlu0 %v187, 120
    %v195 = vpop.permute.xlu0 %194
    %196 = vrot.lane.b32.xlu0 %v182, 112
    %v197 = vpop.permute.xlu0 %196
    %198 = vrot.lane.b32.xlu0 %v187, 112
    %v199 = vpop.permute.xlu0 %198
    %200 = vrot.lane.b32.xlu0 %v182, 104
    %v201 = vpop.permute.xlu0 %200
    %202 = vrot.lane.b32.xlu0 %v187, 104
    %v203 = vpop.permute.xlu0 %202
    %204 = vrot.lane.b32.xlu0 %v182, 96
    %v205 = vpop.permute.xlu0 %204
    %206 = vrot.lane.b32.xlu0 %v187, 96
    %v207 = vpop.permute.xlu0 %206
    %vm208 = vcmask 64512
    %v209 = vsel %vm208, %v182, 0
    %v211 = vsel %vm208, %v187, 0
    %v213 = vsel %vm208, %v205, 0
    %v215 = vsel %vm208, %v207, 0
    %217 = vmatprep.subr.mxu0 0.0
    %218 = vmatpush1.xpose.msra.mxu0 %v213
    %219 = vmatprep.subr.mxu0 0.0
    %220 = vmatpush1.xpose.msra.mxu0 %v215
    %221 = vmatprep.subr.mxu0 0.0
    %222 = vmatpush1.xpose.msra.mxu0 0.0
    %223 = vmatprep.subr.mxu0 0.0
    %224 = vmatpush1.xpose.msra.mxu0 0.0
    %225 = vmatprep.subr.mxu0 0.0
    %226 = vmatpush1.xpose.msra.mxu0 0.0
    %227 = vmatprep.subr.mxu0 0.0
    %228 = vmatpush1.xpose.msra.mxu0 0.0
    %229 = vmatprep.subr.mxu0 0.0
    %230 = vmatpush1.xpose.msra.mxu0 0.0
    %231 = vmatprep.subr.mxu0 0.0
    %232 = vmatpush1.xpose.msra.mxu0 0.0
    %233 = vmatprep.subr.mxu0 0.0
    %234 = vmatpush1.xpose.msra.mxu0 0.0
    %235 = vmatprep.subr.mxu0 0.0
    %236 = vmatpush1.xpose.msra.mxu0 0.0
    %237 = vmatprep.subr.mxu0 0.0
    %238 = vmatpush1.xpose.msra.mxu0 0.0
    %239 = vmatprep.subr.mxu0 0.0
    %240 = vmatpush1.xpose.msra.mxu0 0.0
    %241 = vmatprep.subr.mxu0 0.0
    %242 = vmatpush1.xpose.msra.mxu0 0.0
    %243 = vmatprep.subr.mxu0 0.0
    %244 = vmatpush1.xpose.msra.mxu0 0.0
    %245 = vmatprep.subr.mxu0 0.0
    %246 = vmatpush1.xpose.msra.mxu0 0.0
    %247 = vmatprep.subr.mxu0 0.0
    %248 = vmatpush1.xpose.msra.mxu0 0.0
    %249 = vmatprep.subr.mxu0 0.0
    %250 = vmatpush1.xpose.msra.mxu0 0.0
    %251 = vmatprep.subr.mxu0 0.0
    %252 = vmatpush1.xpose.msra.mxu0 0.0
    %253 = vmatprep.subr.mxu0 0.0
    %254 = vmatpush1.xpose.msra.mxu0 0.0
    %255 = vmatprep.subr.mxu0 0.0
    %256 = vmatpush1.xpose.msra.mxu0 0.0
    %257 = vmatprep.subr.mxu0 0.0
    %258 = vmatpush1.xpose.msra.mxu0 0.0
    %259 = vmatprep.subr.mxu0 0.0
    %260 = vmatpush1.xpose.msra.mxu0 0.0
    %261 = vmatprep.subr.mxu0 0.0
    %262 = vmatpush1.xpose.msra.mxu0 0.0
    %263 = vmatprep.subr.mxu0 0.0
    %264 = vmatpush1.xpose.msra.mxu0 0.0
    %265 = vmatprep.subr.mxu0 0.0
    %266 = vmatpush1.xpose.msra.mxu0 0.0
    %267 = vmatprep.subr.mxu0 0.0
    %268 = vmatpush1.xpose.msra.mxu0 0.0
    %269 = vmatprep.subr.mxu0 0.0
    %270 = vmatpush1.xpose.msra.mxu0 0.0
    %271 = vmatprep.subr.mxu0 0.0
    %272 = vmatpush1.xpose.msra.mxu0 0.0
    %273 = vmatprep.subr.mxu0 0.0
    %274 = vmatpush1.xpose.msra.mxu0 0.0
    %275 = vmatprep.subr.mxu0 0.0
    %276 = vmatpush1.xpose.msra.mxu0 0.0
    %277 = vmatprep.subr.mxu0 0.0
    %278 = vmatpush1.xpose.msra.mxu0 0.0
    %279 = vmatprep.subr.mxu0 0.0
    %280 = vmatpush1.xpose.msra.mxu0 0.0
    %281 = vmatprep.mubr.f32.mxu0 0.0
    %282 = vmatmul.mubr.f32.gmra.mrb[0].mxu0 %v209
    %v283 = vpop.f32.mrb[0].mxu0
    %v284 = vadd.f32 0.0, %v283
    %v285 = vpop.f32.mrb[0].mxu0
    %286 = vmatprep.mubr.f32.mxu0 0.0
    %287 = vmatmul.mubr.f32.gmra.mrb[0].mxu0 %v211
    %v288 = vpop.f32.mrb[0].mxu0
    %v289 = vadd.f32 0.0, %v288
    %v290 = vpop.f32.mrb[0].mxu0
    %291 = vdwg.mxu0
    %292 = vrot.lane.b32.xlu0 %v193, 96
    %v293 = vpop.permute.xlu0 %292
    %294 = vrot.lane.b32.xlu0 %v195, 96
    %v295 = vpop.permute.xlu0 %294
    %v296 = vsel %vm208, %v193, 0
    %v298 = vsel %vm208, %v195, 0
    %v300 = vsel %vm208, %v293, 0
    %v302 = vsel %vm208, %v295, 0
    %304 = vmatprep.subr.mxu0 0.0
    %305 = vmatpush1.xpose.msra.mxu0 %v300
    %306 = vmatprep.subr.mxu0 0.0
    %307 = vmatpush1.xpose.msra.mxu0 %v302
    %308 = vmatprep.subr.mxu0 0.0
    %309 = vmatpush1.xpose.msra.mxu0 0.0
    %310 = vmatprep.subr.mxu0 0.0
    %311 = vmatpush1.xpose.msra.mxu0 0.0
    %312 = vmatprep.subr.mxu0 0.0
    %313 = vmatpush1.xpose.msra.mxu0 0.0
    %314 = vmatprep.subr.mxu0 0.0
    %315 = vmatpush1.xpose.msra.mxu0 0.0
    %316 = vmatprep.subr.mxu0 0.0
    %317 = vmatpush1.xpose.msra.mxu0 0.0
    %318 = vmatprep.subr.mxu0 0.0
    %319 = vmatpush1.xpose.msra.mxu0 0.0
    %320 = vmatprep.subr.mxu0 0.0
    %321 = vmatpush1.xpose.msra.mxu0 0.0
    %322 = vmatprep.subr.mxu0 0.0
    %323 = vmatpush1.xpose.msra.mxu0 0.0
    %324 = vmatprep.subr.mxu0 0.0
    %325 = vmatpush1.xpose.msra.mxu0 0.0
    %326 = vmatprep.subr.mxu0 0.0
    %327 = vmatpush1.xpose.msra.mxu0 0.0
    %328 = vmatprep.subr.mxu0 0.0
    %329 = vmatpush1.xpose.msra.mxu0 0.0
    %330 = vmatprep.subr.mxu0 0.0
    %331 = vmatpush1.xpose.msra.mxu0 0.0
    %332 = vmatprep.subr.mxu0 0.0
    %333 = vmatpush1.xpose.msra.mxu0 0.0
    %334 = vmatprep.subr.mxu0 0.0
    %335 = vmatpush1.xpose.msra.mxu0 0.0
    %336 = vmatprep.subr.mxu0 0.0
    %337 = vmatpush1.xpose.msra.mxu0 0.0
    %338 = vmatprep.subr.mxu0 0.0
    %339 = vmatpush1.xpose.msra.mxu0 0.0
    %340 = vmatprep.subr.mxu0 0.0
    %341 = vmatpush1.xpose.msra.mxu0 0.0
    %342 = vmatprep.subr.mxu0 0.0
    %343 = vmatpush1.xpose.msra.mxu0 0.0
    %344 = vmatprep.subr.mxu0 0.0
    %345 = vmatpush1.xpose.msra.mxu0 0.0
    %346 = vmatprep.subr.mxu0 0.0
    %347 = vmatpush1.xpose.msra.mxu0 0.0
    %348 = vmatprep.subr.mxu0 0.0
    %349 = vmatpush1.xpose.msra.mxu0 0.0
    %350 = vmatprep.subr.mxu0 0.0
    %351 = vmatpush1.xpose.msra.mxu0 0.0
    %352 = vmatprep.subr.mxu0 0.0
    %353 = vmatpush1.xpose.msra.mxu0 0.0
    %354 = vmatprep.subr.mxu0 0.0
    %355 = vmatpush1.xpose.msra.mxu0 0.0
    %356 = vmatprep.subr.mxu0 0.0
    %357 = vmatpush1.xpose.msra.mxu0 0.0
    %358 = vmatprep.subr.mxu0 0.0
    %359 = vmatpush1.xpose.msra.mxu0 0.0
    %360 = vmatprep.subr.mxu0 0.0
    %361 = vmatpush1.xpose.msra.mxu0 0.0
    %362 = vmatprep.subr.mxu0 0.0
    %363 = vmatpush1.xpose.msra.mxu0 0.0
    %364 = vmatprep.subr.mxu0 0.0
    %365 = vmatpush1.xpose.msra.mxu0 0.0
    %366 = vmatprep.subr.mxu0 0.0
    %367 = vmatpush1.xpose.msra.mxu0 0.0
    %368 = vmatprep.mubr.f32.mxu0 0.0
    %369 = vmatmul.mubr.f32.gmra.mrb[0].mxu0 %v296
    %v370 = vpop.f32.mrb[0].mxu0
    %v371 = vadd.f32 0.0, %v370
    %v372 = vpop.f32.mrb[0].mxu0
    %373 = vmatprep.mubr.f32.mxu0 0.0
    %374 = vmatmul.mubr.f32.gmra.mrb[0].mxu0 %v298
    %v375 = vpop.f32.mrb[0].mxu0
    %v376 = vadd.f32 0.0, %v375
    %v377 = vpop.f32.mrb[0].mxu0
    %378 = vdwg.mxu0
    %379 = vrot.lane.b32.xlu0 %v197, 96
    %v380 = vpop.permute.xlu0 %379
    %381 = vrot.lane.b32.xlu0 %v199, 96
    %v382 = vpop.permute.xlu0 %381
    %v383 = vsel %vm208, %v197, 0
    %v385 = vsel %vm208, %v199, 0
    %v387 = vsel %vm208, %v380, 0
    %v389 = vsel %vm208, %v382, 0
    %391 = vmatprep.subr.mxu0 0.0
    %392 = vmatpush1.xpose.msra.mxu0 %v387
    %393 = vmatprep.subr.mxu0 0.0
    %394 = vmatpush1.xpose.msra.mxu0 %v389
    %395 = vmatprep.subr.mxu0 0.0
    %396 = vmatpush1.xpose.msra.mxu0 0.0
    %397 = vmatprep.subr.mxu0 0.0
    %398 = vmatpush1.xpose.msra.mxu0 0.0
    %399 = vmatprep.subr.mxu0 0.0
    %400 = vmatpush1.xpose.msra.mxu0 0.0
    %401 = vmatprep.subr.mxu0 0.0
    %402 = vmatpush1.xpose.msra.mxu0 0.0
    %403 = vmatprep.subr.mxu0 0.0
    %404 = vmatpush1.xpose.msra.mxu0 0.0
    %405 = vmatprep.subr.mxu0 0.0
    %406 = vmatpush1.xpose.msra.mxu0 0.0
    %407 = vmatprep.subr.mxu0 0.0
    %408 = vmatpush1.xpose.msra.mxu0 0.0
    %409 = vmatprep.subr.mxu0 0.0
    %410 = vmatpush1.xpose.msra.mxu0 0.0
    %411 = vmatprep.subr.mxu0 0.0
    %412 = vmatpush1.xpose.msra.mxu0 0.0
    %413 = vmatprep.subr.mxu0 0.0
    %414 = vmatpush1.xpose.msra.mxu0 0.0
    %415 = vmatprep.subr.mxu0 0.0
    %416 = vmatpush1.xpose.msra.mxu0 0.0
    %417 = vmatprep.subr.mxu0 0.0
    %418 = vmatpush1.xpose.msra.mxu0 0.0
    %419 = vmatprep.subr.mxu0 0.0
    %420 = vmatpush1.xpose.msra.mxu0 0.0
    %421 = vmatprep.subr.mxu0 0.0
    %422 = vmatpush1.xpose.msra.mxu0 0.0
    %423 = vmatprep.subr.mxu0 0.0
    %424 = vmatpush1.xpose.msra.mxu0 0.0
    %425 = vmatprep.subr.mxu0 0.0
    %426 = vmatpush1.xpose.msra.mxu0 0.0
    %427 = vmatprep.subr.mxu0 0.0
    %428 = vmatpush1.xpose.msra.mxu0 0.0
    %429 = vmatprep.subr.mxu0 0.0
    %430 = vmatpush1.xpose.msra.mxu0 0.0
    %431 = vmatprep.subr.mxu0 0.0
    %432 = vmatpush1.xpose.msra.mxu0 0.0
    %433 = vmatprep.subr.mxu0 0.0
    %434 = vmatpush1.xpose.msra.mxu0 0.0
    %435 = vmatprep.subr.mxu0 0.0
    %436 = vmatpush1.xpose.msra.mxu0 0.0
    %437 = vmatprep.subr.mxu0 0.0
    %438 = vmatpush1.xpose.msra.mxu0 0.0
    %439 = vmatprep.subr.mxu0 0.0
    %440 = vmatpush1.xpose.msra.mxu0 0.0
    %441 = vmatprep.subr.mxu0 0.0
    %442 = vmatpush1.xpose.msra.mxu0 0.0
    %443 = vmatprep.subr.mxu0 0.0
    %444 = vmatpush1.xpose.msra.mxu0 0.0
    %445 = vmatprep.subr.mxu0 0.0
    %446 = vmatpush1.xpose.msra.mxu0 0.0
    %447 = vmatprep.subr.mxu0 0.0
    %448 = vmatpush1.xpose.msra.mxu0 0.0
    %449 = vmatprep.subr.mxu0 0.0
    %450 = vmatpush1.xpose.msra.mxu0 0.0
    %451 = vmatprep.subr.mxu0 0.0
    %452 = vmatpush1.xpose.msra.mxu0 0.0
    %453 = vmatprep.subr.mxu0 0.0
    %454 = vmatpush1.xpose.msra.mxu0 0.0
    %455 = vmatprep.mubr.f32.mxu0 0.0
    %456 = vmatmul.mubr.f32.gmra.mrb[0].mxu0 %v383
    %v457 = vpop.f32.mrb[0].mxu0
    %v458 = vadd.f32 0.0, %v457
    %v459 = vpop.f32.mrb[0].mxu0
    %460 = vmatprep.mubr.f32.mxu0 0.0
    %461 = vmatmul.mubr.f32.gmra.mrb[0].mxu0 %v385
    %v462 = vpop.f32.mrb[0].mxu0
    %v463 = vadd.f32 0.0, %v462
    %v464 = vpop.f32.mrb[0].mxu0
    %465 = vdwg.mxu0
    %466 = vrot.lane.b32.xlu0 %v201, 96
    %v467 = vpop.permute.xlu0 %466
    %468 = vrot.lane.b32.xlu0 %v203, 96
    %v469 = vpop.permute.xlu0 %468
    %v470 = vsel %vm208, %v201, 0
    %v472 = vsel %vm208, %v203, 0
    %v474 = vsel %vm208, %v467, 0
    %v476 = vsel %vm208, %v469, 0
    %478 = vmatprep.subr.mxu0 0.0
    %479 = vmatpush1.xpose.msra.mxu0 %v474
    %480 = vmatprep.subr.mxu0 0.0
    %481 = vmatpush1.xpose.msra.mxu0 %v476
    %482 = vmatprep.subr.mxu0 0.0
    %483 = vmatpush1.xpose.msra.mxu0 0.0
    %484 = vmatprep.subr.mxu0 0.0
    %485 = vmatpush1.xpose.msra.mxu0 0.0
    %486 = vmatprep.subr.mxu0 0.0
    %487 = vmatpush1.xpose.msra.mxu0 0.0
    %488 = vmatprep.subr.mxu0 0.0
    %489 = vmatpush1.xpose.msra.mxu0 0.0
    %490 = vmatprep.subr.mxu0 0.0
    %491 = vmatpush1.xpose.msra.mxu0 0.0
    %492 = vmatprep.subr.mxu0 0.0
    %493 = vmatpush1.xpose.msra.mxu0 0.0
    %494 = vmatprep.subr.mxu0 0.0
    %495 = vmatpush1.xpose.msra.mxu0 0.0
    %496 = vmatprep.subr.mxu0 0.0
    %497 = vmatpush1.xpose.msra.mxu0 0.0
    %498 = vmatprep.subr.mxu0 0.0
    %499 = vmatpush1.xpose.msra.mxu0 0.0
    %500 = vmatprep.subr.mxu0 0.0
    %501 = vmatpush1.xpose.msra.mxu0 0.0
    %502 = vmatprep.subr.mxu0 0.0
    %503 = vmatpush1.xpose.msra.mxu0 0.0
    %504 = vmatprep.subr.mxu0 0.0
    %505 = vmatpush1.xpose.msra.mxu0 0.0
    %506 = vmatprep.subr.mxu0 0.0
    %507 = vmatpush1.xpose.msra.mxu0 0.0
    %508 = vmatprep.subr.mxu0 0.0
    %509 = vmatpush1.xpose.msra.mxu0 0.0
    %510 = vmatprep.subr.mxu0 0.0
    %511 = vmatpush1.xpose.msra.mxu0 0.0
    %512 = vmatprep.subr.mxu0 0.0
    %513 = vmatpush1.xpose.msra.mxu0 0.0
    %514 = vmatprep.subr.mxu0 0.0
    %515 = vmatpush1.xpose.msra.mxu0 0.0
    %516 = vmatprep.subr.mxu0 0.0
    %517 = vmatpush1.xpose.msra.mxu0 0.0
    %518 = vmatprep.subr.mxu0 0.0
    %519 = vmatpush1.xpose.msra.mxu0 0.0
    %520 = vmatprep.subr.mxu0 0.0
    %521 = vmatpush1.xpose.msra.mxu0 0.0
    %522 = vmatprep.subr.mxu0 0.0
    %523 = vmatpush1.xpose.msra.mxu0 0.0
    %524 = vmatprep.subr.mxu0 0.0
    %525 = vmatpush1.xpose.msra.mxu0 0.0
    %526 = vmatprep.subr.mxu0 0.0
    %527 = vmatpush1.xpose.msra.mxu0 0.0
    %528 = vmatprep.subr.mxu0 0.0
    %529 = vmatpush1.xpose.msra.mxu0 0.0
    %530 = vmatprep.subr.mxu0 0.0
    %531 = vmatpush1.xpose.msra.mxu0 0.0
    %532 = vmatprep.subr.mxu0 0.0
    %533 = vmatpush1.xpose.msra.mxu0 0.0
    %534 = vmatprep.subr.mxu0 0.0
    %535 = vmatpush1.xpose.msra.mxu0 0.0
    %536 = vmatprep.subr.mxu0 0.0
    %537 = vmatpush1.xpose.msra.mxu0 0.0
    %538 = vmatprep.subr.mxu0 0.0
    %539 = vmatpush1.xpose.msra.mxu0 0.0
    %540 = vmatprep.subr.mxu0 0.0
    %541 = vmatpush1.xpose.msra.mxu0 0.0
    %542 = vmatprep.mubr.f32.mxu0 0.0
    %543 = vmatmul.mubr.f32.gmra.mrb[0].mxu0 %v470
    %v544 = vpop.f32.mrb[0].mxu0
    %v545 = vadd.f32 0.0, %v544
    %v546 = vpop.f32.mrb[0].mxu0
    %547 = vmatprep.mubr.f32.mxu0 0.0
    %548 = vmatmul.mubr.f32.gmra.mrb[0].mxu0 %v472
    %v549 = vpop.f32.mrb[0].mxu0
    %v550 = vadd.f32 0.0, %v549
    %v551 = vpop.f32.mrb[0].mxu0
    %552 = vdwg.mxu0
    %vm553 = vcmp.gt.f32.partialorder %v57, 0.0
    %vm554 = vcmp.gt.f32.partialorder %v58, 0.0
    %v555 = vsel %vm553, 1, 0
    %v556 = vsel %vm554, 1, 0
    %vm557 = vcmp.eq.s32.totalorder %v555, 1
    %vm558 = vcmp.eq.s32.totalorder %v556, 1
    %v559 = vsel %vm557, %v284, -1e+09
    %v560 = vsel %vm558, %v289, -1e+09
    %v561 = vsel %vm557, %v371, -1e+09
    %v562 = vsel %vm558, %v376, -1e+09
    %v563 = vsel %vm557, %v458, -1e+09
    %v564 = vsel %vm558, %v463, -1e+09
    %v565 = vsel %vm557, %v545, -1e+09
    %v566 = vsel %vm558, %v550, -1e+09
    %vm567 = vcmask 130048
    %v568 = vsel %vm567, %v559, -inf
    %569 = vmax.xlane.f32.xlu0 %v568
    %v570 = vpop.xlane.xlu0 %569
    %v571 = vsel %vm567, %v560, -inf
    %572 = vmax.xlane.f32.xlu0 %v571
    %v573 = vpop.xlane.xlu0 %572
    %v574 = vsel %vm567, %v561, -inf
    %575 = vmax.xlane.f32.xlu0 %v574
    %v576 = vpop.xlane.xlu0 %575
    %v577 = vsel %vm567, %v562, -inf
    %578 = vmax.xlane.f32.xlu0 %v577
    %v579 = vpop.xlane.xlu0 %578
    %v580 = vsel %vm567, %v563, -inf
    %581 = vmax.xlane.f32.xlu0 %v580
    %v582 = vpop.xlane.xlu0 %581
    %v583 = vsel %vm567, %v564, -inf
    %584 = vmax.xlane.f32.xlu0 %v583
    %v585 = vpop.xlane.xlu0 %584
    %v586 = vsel %vm567, %v565, -inf
    %587 = vmax.xlane.f32.xlu0 %v586
    %v588 = vpop.xlane.xlu0 %587
    %v589 = vsel %vm567, %v566, -inf
    %590 = vmax.xlane.f32.xlu0 %v589
    %v591 = vpop.xlane.xlu0 %590
    %v592 = vsub.f32 %v559, %v570
    %v593 = vsub.f32 %v560, %v573
    %v594 = vsub.f32 %v561, %v576
    %v595 = vsub.f32 %v562, %v579
    %v596 = vsub.f32 %v563, %v582
    %v597 = vsub.f32 %v564, %v585
    %v598 = vsub.f32 %v565, %v588
    %v599 = vsub.f32 %v566, %v591
    %v600 = vmul.f32 %v592, 1.442695
    %v601 = vpow.pop %v600
    %v602 = vmul.f32 %v593, 1.442695
    %v603 = vpow.pop %v602
    %v604 = vmul.f32 %v594, 1.442695
    %v605 = vpow.pop %v604
    %v606 = vmul.f32 %v595, 1.442695
    %v607 = vpow.pop %v606
    %v608 = vmul.f32 %v596, 1.442695
    %v609 = vpow.pop %v608
    %v610 = vmul.f32 %v597, 1.442695
    %v611 = vpow.pop %v610
    %v612 = vmul.f32 %v598, 1.442695
    %v613 = vpow.pop %v612
    %v614 = vmul.f32 %v599, 1.442695
    %v615 = vpow.pop %v614
    %v616 = vsel %vm567, %v601, 0.0
    %617 = vadd.xlane.f32.xlu0 %v616
    %v618 = vpop.xlane.xlu0 %617
    %v619 = vsel %vm567, %v603, 0.0
    %620 = vadd.xlane.f32.xlu0 %v619
    %v621 = vpop.xlane.xlu0 %620
    %v622 = vsel %vm567, %v605, 0.0
    %623 = vadd.xlane.f32.xlu0 %v622
    %v624 = vpop.xlane.xlu0 %623
    %v625 = vsel %vm567, %v607, 0.0
    %626 = vadd.xlane.f32.xlu0 %v625
    %v627 = vpop.xlane.xlu0 %626
    %v628 = vsel %vm567, %v609, 0.0
    %629 = vadd.xlane.f32.xlu0 %v628
    %v630 = vpop.xlane.xlu0 %629
    %v631 = vsel %vm567, %v611, 0.0
    %632 = vadd.xlane.f32.xlu0 %v631
    %v633 = vpop.xlane.xlu0 %632
    %v634 = vsel %vm567, %v613, 0.0
    %635 = vadd.xlane.f32.xlu0 %v634
    %v636 = vpop.xlane.xlu0 %635
    %v637 = vsel %vm567, %v615, 0.0
    %638 = vadd.xlane.f32.xlu0 %v637
    %v639 = vpop.xlane.xlu0 %638
    %v640 = vrcp.pop %v618
    %v641 = vrcp.pop %v621
    %v642 = vrcp.pop %v624
    %v643 = vrcp.pop %v627
    %v644 = vrcp.pop %v630
    %v645 = vrcp.pop %v633
    %v646 = vrcp.pop %v636
    %v647 = vrcp.pop %v639
    %v648 = vmul.f32 %v601, %v640
    %v649 = vmul.f32 %v603, %v641
    %v650 = vmul.f32 %v605, %v642
    %v651 = vmul.f32 %v607, %v643
    %v652 = vmul.f32 %v609, %v644
    %v653 = vmul.f32 %v611, %v645
    %v654 = vmul.f32 %v613, %v646
    %v655 = vmul.f32 %v615, %v647
    %656 = vrot.lane.b32.xlu0 %v182, 64
    %v657 = vpop.permute.xlu0 %656
    %658 = vrot.lane.b32.xlu0 %v187, 64
    %v659 = vpop.permute.xlu0 %658
    %v663 = vsel %vm567, %v648, 0
    %v666 = vsel %vm567, %v649, 0
    %668 = vmatprep.subr.mxu0 0.0
    %669 = vmatpush1.msra.mxu0 %v657
    %670 = vmatprep.subr.mxu0 0.0
    %671 = vmatpush1.msra.mxu0 %v659
    %672 = vmatprep.subr.mxu0 0.0
    %673 = vmatpush1.msra.mxu0 0.0
    %674 = vmatprep.subr.mxu0 0.0
    %675 = vmatpush1.msra.mxu0 0.0
    %676 = vmatprep.subr.mxu0 0.0
    %677 = vmatpush1.msra.mxu0 0.0
    %678 = vmatprep.subr.mxu0 0.0
    %679 = vmatpush1.msra.mxu0 0.0
    %680 = vmatprep.subr.mxu0 0.0
    %681 = vmatpush1.msra.mxu0 0.0
    %682 = vmatprep.subr.mxu0 0.0
    %683 = vmatpush1.msra.mxu0 0.0
    %684 = vmatprep.subr.mxu0 0.0
    %685 = vmatpush1.msra.mxu0 0.0
    %686 = vmatprep.subr.mxu0 0.0
    %687 = vmatpush1.msra.mxu0 0.0
    %688 = vmatprep.subr.mxu0 0.0
    %689 = vmatpush1.msra.mxu0 0.0
    %690 = vmatprep.subr.mxu0 0.0
    %691 = vmatpush1.msra.mxu0 0.0
    %692 = vmatprep.subr.mxu0 0.0
    %693 = vmatpush1.msra.mxu0 0.0
    %694 = vmatprep.subr.mxu0 0.0
    %695 = vmatpush1.msra.mxu0 0.0
    %696 = vmatprep.subr.mxu0 0.0
    %697 = vmatpush1.msra.mxu0 0.0
    %698 = vmatprep.subr.mxu0 0.0
    %699 = vmatpush1.msra.mxu0 0.0
    %700 = vmatprep.subr.mxu0 0.0
    %701 = vmatpush1.msra.mxu0 0.0
    %702 = vmatprep.subr.mxu0 0.0
    %703 = vmatpush1.msra.mxu0 0.0
    %704 = vmatprep.subr.mxu0 0.0
    %705 = vmatpush1.msra.mxu0 0.0
    %706 = vmatprep.subr.mxu0 0.0
    %707 = vmatpush1.msra.mxu0 0.0
    %708 = vmatprep.subr.mxu0 0.0
    %709 = vmatpush1.msra.mxu0 0.0
    %710 = vmatprep.subr.mxu0 0.0
    %711 = vmatpush1.msra.mxu0 0.0
    %712 = vmatprep.subr.mxu0 0.0
    %713 = vmatpush1.msra.mxu0 0.0
    %714 = vmatprep.subr.mxu0 0.0
    %715 = vmatpush1.msra.mxu0 0.0
    %716 = vmatprep.subr.mxu0 0.0
    %717 = vmatpush1.msra.mxu0 0.0
    %718 = vmatprep.subr.mxu0 0.0
    %719 = vmatpush1.msra.mxu0 0.0
    %720 = vmatprep.subr.mxu0 0.0
    %721 = vmatpush1.msra.mxu0 0.0
    %722 = vmatprep.subr.mxu0 0.0
    %723 = vmatpush1.msra.mxu0 0.0
    %724 = vmatprep.subr.mxu0 0.0
    %725 = vmatpush1.msra.mxu0 0.0
    %726 = vmatprep.subr.mxu0 0.0
    %727 = vmatpush1.msra.mxu0 0.0
    %728 = vmatprep.subr.mxu0 0.0
    %729 = vmatpush1.msra.mxu0 0.0
    %730 = vmatprep.subr.mxu0 0.0
    %731 = vmatpush1.msra.mxu0 0.0
    %732 = vmatprep.mubr.f32.mxu0 0.0
    %733 = vmatmul.mubr.f32.gmra.mrb[0].mxu0 %v663
    %v734 = vpop.f32.mrb[0].mxu0
    %v735 = vadd.f32 0.0, %v734
    %v736 = vpop.f32.mrb[0].mxu0
    %737 = vmatprep.mubr.f32.mxu0 0.0
    %738 = vmatmul.mubr.f32.gmra.mrb[0].mxu0 %v666
    %v739 = vpop.f32.mrb[0].mxu0
    %v740 = vadd.f32 0.0, %v739
    %v741 = vpop.f32.mrb[0].mxu0
    %742 = vdwg.mxu0
    %743 = vrot.lane.b32.xlu0 %v193, 64
    %v744 = vpop.permute.xlu0 %743
    %745 = vrot.lane.b32.xlu0 %v195, 64
    %v746 = vpop.permute.xlu0 %745
    %v750 = vsel %vm567, %v650, 0
    %v753 = vsel %vm567, %v651, 0
    %755 = vmatprep.subr.mxu0 0.0
    %756 = vmatpush1.msra.mxu0 %v744
    %757 = vmatprep.subr.mxu0 0.0
    %758 = vmatpush1.msra.mxu0 %v746
    %759 = vmatprep.subr.mxu0 0.0
    %760 = vmatpush1.msra.mxu0 0.0
    %761 = vmatprep.subr.mxu0 0.0
    %762 = vmatpush1.msra.mxu0 0.0
    %763 = vmatprep.subr.mxu0 0.0
    %764 = vmatpush1.msra.mxu0 0.0
    %765 = vmatprep.subr.mxu0 0.0
    %766 = vmatpush1.msra.mxu0 0.0
    %767 = vmatprep.subr.mxu0 0.0
    %768 = vmatpush1.msra.mxu0 0.0
    %769 = vmatprep.subr.mxu0 0.0
    %770 = vmatpush1.msra.mxu0 0.0
    %771 = vmatprep.subr.mxu0 0.0
    %772 = vmatpush1.msra.mxu0 0.0
    %773 = vmatprep.subr.mxu0 0.0
    %774 = vmatpush1.msra.mxu0 0.0
    %775 = vmatprep.subr.mxu0 0.0
    %776 = vmatpush1.msra.mxu0 0.0
    %777 = vmatprep.subr.mxu0 0.0
    %778 = vmatpush1.msra.mxu0 0.0
    %779 = vmatprep.subr.mxu0 0.0
    %780 = vmatpush1.msra.mxu0 0.0
    %781 = vmatprep.subr.mxu0 0.0
    %782 = vmatpush1.msra.mxu0 0.0
    %783 = vmatprep.subr.mxu0 0.0
    %784 = vmatpush1.msra.mxu0 0.0
    %785 = vmatprep.subr.mxu0 0.0
    %786 = vmatpush1.msra.mxu0 0.0
    %787 = vmatprep.subr.mxu0 0.0
    %788 = vmatpush1.msra.mxu0 0.0
    %789 = vmatprep.subr.mxu0 0.0
    %790 = vmatpush1.msra.mxu0 0.0
    %791 = vmatprep.subr.mxu0 0.0
    %792 = vmatpush1.msra.mxu0 0.0
    %793 = vmatprep.subr.mxu0 0.0
    %794 = vmatpush1.msra.mxu0 0.0
    %795 = vmatprep.subr.mxu0 0.0
    %796 = vmatpush1.msra.mxu0 0.0
    %797 = vmatprep.subr.mxu0 0.0
    %798 = vmatpush1.msra.mxu0 0.0
    %799 = vmatprep.subr.mxu0 0.0
    %800 = vmatpush1.msra.mxu0 0.0
    %801 = vmatprep.subr.mxu0 0.0
    %802 = vmatpush1.msra.mxu0 0.0
    %803 = vmatprep.subr.mxu0 0.0
    %804 = vmatpush1.msra.mxu0 0.0
    %805 = vmatprep.subr.mxu0 0.0
    %806 = vmatpush1.msra.mxu0 0.0
    %807 = vmatprep.subr.mxu0 0.0
    %808 = vmatpush1.msra.mxu0 0.0
    %809 = vmatprep.subr.mxu0 0.0
    %810 = vmatpush1.msra.mxu0 0.0
    %811 = vmatprep.subr.mxu0 0.0
    %812 = vmatpush1.msra.mxu0 0.0
    %813 = vmatprep.subr.mxu0 0.0
    %814 = vmatpush1.msra.mxu0 0.0
    %815 = vmatprep.subr.mxu0 0.0
    %816 = vmatpush1.msra.mxu0 0.0
    %817 = vmatprep.subr.mxu0 0.0
    %818 = vmatpush1.msra.mxu0 0.0
    %819 = vmatprep.mubr.f32.mxu0 0.0
    %820 = vmatmul.mubr.f32.gmra.mrb[0].mxu0 %v750
    %v821 = vpop.f32.mrb[0].mxu0
    %v822 = vadd.f32 0.0, %v821
    %v823 = vpop.f32.mrb[0].mxu0
    %824 = vmatprep.mubr.f32.mxu0 0.0
    %825 = vmatmul.mubr.f32.gmra.mrb[0].mxu0 %v753
    %v826 = vpop.f32.mrb[0].mxu0
    %v827 = vadd.f32 0.0, %v826
    %v828 = vpop.f32.mrb[0].mxu0
    %829 = vdwg.mxu0
    %830 = vrot.lane.b32.xlu0 %v197, 64
    %v831 = vpop.permute.xlu0 %830
    %832 = vrot.lane.b32.xlu0 %v199, 64
    %v833 = vpop.permute.xlu0 %832
    %v837 = vsel %vm567, %v652, 0
    %v840 = vsel %vm567, %v653, 0
    %842 = vmatprep.subr.mxu0 0.0
    %843 = vmatpush1.msra.mxu0 %v831
    %844 = vmatprep.subr.mxu0 0.0
    %845 = vmatpush1.msra.mxu0 %v833
    %846 = vmatprep.subr.mxu0 0.0
    %847 = vmatpush1.msra.mxu0 0.0
    %848 = vmatprep.subr.mxu0 0.0
    %849 = vmatpush1.msra.mxu0 0.0
    %850 = vmatprep.subr.mxu0 0.0
    %851 = vmatpush1.msra.mxu0 0.0
    %852 = vmatprep.subr.mxu0 0.0
    %853 = vmatpush1.msra.mxu0 0.0
    %854 = vmatprep.subr.mxu0 0.0
    %855 = vmatpush1.msra.mxu0 0.0
    %856 = vmatprep.subr.mxu0 0.0
    %857 = vmatpush1.msra.mxu0 0.0
    %858 = vmatprep.subr.mxu0 0.0
    %859 = vmatpush1.msra.mxu0 0.0
    %860 = vmatprep.subr.mxu0 0.0
    %861 = vmatpush1.msra.mxu0 0.0
    %862 = vmatprep.subr.mxu0 0.0
    %863 = vmatpush1.msra.mxu0 0.0
    %864 = vmatprep.subr.mxu0 0.0
    %865 = vmatpush1.msra.mxu0 0.0
    %866 = vmatprep.subr.mxu0 0.0
    %867 = vmatpush1.msra.mxu0 0.0
    %868 = vmatprep.subr.mxu0 0.0
    %869 = vmatpush1.msra.mxu0 0.0
    %870 = vmatprep.subr.mxu0 0.0
    %871 = vmatpush1.msra.mxu0 0.0
    %872 = vmatprep.subr.mxu0 0.0
    %873 = vmatpush1.msra.mxu0 0.0
    %874 = vmatprep.subr.mxu0 0.0
    %875 = vmatpush1.msra.mxu0 0.0
    %876 = vmatprep.subr.mxu0 0.0
    %877 = vmatpush1.msra.mxu0 0.0
    %878 = vmatprep.subr.mxu0 0.0
    %879 = vmatpush1.msra.mxu0 0.0
    %880 = vmatprep.subr.mxu0 0.0
    %881 = vmatpush1.msra.mxu0 0.0
    %882 = vmatprep.subr.mxu0 0.0
    %883 = vmatpush1.msra.mxu0 0.0
    %884 = vmatprep.subr.mxu0 0.0
    %885 = vmatpush1.msra.mxu0 0.0
    %886 = vmatprep.subr.mxu0 0.0
    %887 = vmatpush1.msra.mxu0 0.0
    %888 = vmatprep.subr.mxu0 0.0
    %889 = vmatpush1.msra.mxu0 0.0
    %890 = vmatprep.subr.mxu0 0.0
    %891 = vmatpush1.msra.mxu0 0.0
    %892 = vmatprep.subr.mxu0 0.0
    %893 = vmatpush1.msra.mxu0 0.0
    %894 = vmatprep.subr.mxu0 0.0
    %895 = vmatpush1.msra.mxu0 0.0
    %896 = vmatprep.subr.mxu0 0.0
    %897 = vmatpush1.msra.mxu0 0.0
    %898 = vmatprep.subr.mxu0 0.0
    %899 = vmatpush1.msra.mxu0 0.0
    %900 = vmatprep.subr.mxu0 0.0
    %901 = vmatpush1.msra.mxu0 0.0
    %902 = vmatprep.subr.mxu0 0.0
    %903 = vmatpush1.msra.mxu0 0.0
    %904 = vmatprep.subr.mxu0 0.0
    %905 = vmatpush1.msra.mxu0 0.0
    %906 = vmatprep.mubr.f32.mxu0 0.0
    %907 = vmatmul.mubr.f32.gmra.mrb[0].mxu0 %v837
    %v908 = vpop.f32.mrb[0].mxu0
    %v909 = vadd.f32 0.0, %v908
    %v910 = vpop.f32.mrb[0].mxu0
    %911 = vmatprep.mubr.f32.mxu0 0.0
    %912 = vmatmul.mubr.f32.gmra.mrb[0].mxu0 %v840
    %v913 = vpop.f32.mrb[0].mxu0
    %v914 = vadd.f32 0.0, %v913
    %v915 = vpop.f32.mrb[0].mxu0
    %916 = vdwg.mxu0
    %917 = vrot.lane.b32.xlu0 %v201, 64
    %v918 = vpop.permute.xlu0 %917
    %919 = vrot.lane.b32.xlu0 %v203, 64
    %v920 = vpop.permute.xlu0 %919
    %v924 = vsel %vm567, %v654, 0
    %v927 = vsel %vm567, %v655, 0
    %929 = vmatprep.subr.mxu0 0.0
    %930 = vmatpush1.msra.mxu0 %v918
    %931 = vmatprep.subr.mxu0 0.0
    %932 = vmatpush1.msra.mxu0 %v920
    %933 = vmatprep.subr.mxu0 0.0
    %934 = vmatpush1.msra.mxu0 0.0
    %935 = vmatprep.subr.mxu0 0.0
    %936 = vmatpush1.msra.mxu0 0.0
    %937 = vmatprep.subr.mxu0 0.0
    %938 = vmatpush1.msra.mxu0 0.0
    %939 = vmatprep.subr.mxu0 0.0
    %940 = vmatpush1.msra.mxu0 0.0
    %941 = vmatprep.subr.mxu0 0.0
    %942 = vmatpush1.msra.mxu0 0.0
    %943 = vmatprep.subr.mxu0 0.0
    %944 = vmatpush1.msra.mxu0 0.0
    %945 = vmatprep.subr.mxu0 0.0
    %946 = vmatpush1.msra.mxu0 0.0
    %947 = vmatprep.subr.mxu0 0.0
    %948 = vmatpush1.msra.mxu0 0.0
    %949 = vmatprep.subr.mxu0 0.0
    %950 = vmatpush1.msra.mxu0 0.0
    %951 = vmatprep.subr.mxu0 0.0
    %952 = vmatpush1.msra.mxu0 0.0
    %953 = vmatprep.subr.mxu0 0.0
    %954 = vmatpush1.msra.mxu0 0.0
    %955 = vmatprep.subr.mxu0 0.0
    %956 = vmatpush1.msra.mxu0 0.0
    %957 = vmatprep.subr.mxu0 0.0
    %958 = vmatpush1.msra.mxu0 0.0
    %959 = vmatprep.subr.mxu0 0.0
    %960 = vmatpush1.msra.mxu0 0.0
    %961 = vmatprep.subr.mxu0 0.0
    %962 = vmatpush1.msra.mxu0 0.0
    %963 = vmatprep.subr.mxu0 0.0
    %964 = vmatpush1.msra.mxu0 0.0
    %965 = vmatprep.subr.mxu0 0.0
    %966 = vmatpush1.msra.mxu0 0.0
    %967 = vmatprep.subr.mxu0 0.0
    %968 = vmatpush1.msra.mxu0 0.0
    %969 = vmatprep.subr.mxu0 0.0
    %970 = vmatpush1.msra.mxu0 0.0
    %971 = vmatprep.subr.mxu0 0.0
    %972 = vmatpush1.msra.mxu0 0.0
    %973 = vmatprep.subr.mxu0 0.0
    %974 = vmatpush1.msra.mxu0 0.0
    %975 = vmatprep.subr.mxu0 0.0
    %976 = vmatpush1.msra.mxu0 0.0
    %977 = vmatprep.subr.mxu0 0.0
    %978 = vmatpush1.msra.mxu0 0.0
    %979 = vmatprep.subr.mxu0 0.0
    %980 = vmatpush1.msra.mxu0 0.0
    %981 = vmatprep.subr.mxu0 0.0
    %982 = vmatpush1.msra.mxu0 0.0
    %983 = vmatprep.subr.mxu0 0.0
    %984 = vmatpush1.msra.mxu0 0.0
    %985 = vmatprep.subr.mxu0 0.0
    %986 = vmatpush1.msra.mxu0 0.0
    %987 = vmatprep.subr.mxu0 0.0
    %988 = vmatpush1.msra.mxu0 0.0
    %989 = vmatprep.subr.mxu0 0.0
    %990 = vmatpush1.msra.mxu0 0.0
    %991 = vmatprep.subr.mxu0 0.0
    %992 = vmatpush1.msra.mxu0 0.0
    %993 = vmatprep.mubr.f32.mxu0 0.0
    %994 = vmatmul.mubr.f32.gmra.mrb[0].mxu0 %v924
    %v995 = vpop.f32.mrb[0].mxu0
    %v996 = vadd.f32 0.0, %v995
    %v997 = vpop.f32.mrb[0].mxu0
    %998 = vmatprep.mubr.f32.mxu0 0.0
    %999 = vmatmul.mubr.f32.gmra.mrb[0].mxu0 %v927
    %v1000 = vpop.f32.mrb[0].mxu0
    %v1001 = vadd.f32 0.0, %v1000
    %v1002 = vpop.f32.mrb[0].mxu0
    %1003 = vdwg.mxu0
    %1006 = vrot.lane.b32.xlu0 %v822, 8
    %v1007 = vpop.permute.xlu0 %1006
    %1008 = vrot.lane.b32.xlu0 %v827, 8
    %v1009 = vpop.permute.xlu0 %1008
    %1014 = vrot.lane.b32.xlu0 %v909, 16
    %v1015 = vpop.permute.xlu0 %1014
    %1016 = vrot.lane.b32.xlu0 %v914, 16
    %v1017 = vpop.permute.xlu0 %1016
    %1022 = vrot.lane.b32.xlu0 %v996, 24
    %v1023 = vpop.permute.xlu0 %1022
    %1024 = vrot.lane.b32.xlu0 %v1001, 24
    %v1025 = vpop.permute.xlu0 %1024
    %v1028 = vsel %vm208, %v735, %v1007
    %v1029 = vsel %vm208, %v740, %v1009
    %v1030 = vsel %vm567, %v1028, %v1015
    %v1031 = vsel %vm567, %v1029, %v1017
    %vm1032 = vcmask 195584
    %v1033 = vsel %vm1032, %v1030, %v1023
    %v1034 = vsel %vm1032, %v1031, %v1025
    %v1035 = vld [vmem:[%s3] sm:$0xff]
    %v1036 = vld [vmem:[%s3 + $0x8] sm:$0xff]
    %v1037 = vld [vmem:[%s3 + $0x10] sm:$0xff]
    %v1038 = vld [vmem:[%s3 + $0x18] sm:$0xff]
    %v1040 = vsel %vm65, %v1033, 0
    %v1043 = vsel %vm65, %v1034, 0
    %1045 = vmatprep.subr.mxu0 0.0
    %1046 = vmatpush1.msra.mxu0 %v1035
    %1047 = vmatprep.subr.mxu0 0.0
    %1048 = vmatpush1.msra.mxu0 %v1036
    %1049 = vmatprep.subr.mxu0 0.0
    %1050 = vmatpush1.msra.mxu0 %v1037
    %1051 = vmatprep.subr.mxu0 0.0
    %1052 = vmatpush1.msra.mxu0 %v1038
    %1053 = vmatprep.subr.mxu0 0.0
    %1054 = vmatpush1.msra.mxu0 0.0
    %1055 = vmatprep.subr.mxu0 0.0
    %1056 = vmatpush1.msra.mxu0 0.0
    %1057 = vmatprep.subr.mxu0 0.0
    %1058 = vmatpush1.msra.mxu0 0.0
    %1059 = vmatprep.subr.mxu0 0.0
    %1060 = vmatpush1.msra.mxu0 0.0
    %1061 = vmatprep.subr.mxu0 0.0
    %1062 = vmatpush1.msra.mxu0 0.0
    %1063 = vmatprep.subr.mxu0 0.0
    %1064 = vmatpush1.msra.mxu0 0.0
    %1065 = vmatprep.subr.mxu0 0.0
    %1066 = vmatpush1.msra.mxu0 0.0
    %1067 = vmatprep.subr.mxu0 0.0
    %1068 = vmatpush1.msra.mxu0 0.0
    %1069 = vmatprep.subr.mxu0 0.0
    %1070 = vmatpush1.msra.mxu0 0.0
    %1071 = vmatprep.subr.mxu0 0.0
    %1072 = vmatpush1.msra.mxu0 0.0
    %1073 = vmatprep.subr.mxu0 0.0
    %1074 = vmatpush1.msra.mxu0 0.0
    %1075 = vmatprep.subr.mxu0 0.0
    %1076 = vmatpush1.msra.mxu0 0.0
    %1077 = vmatprep.subr.mxu0 0.0
    %1078 = vmatpush1.msra.mxu0 0.0
    %1079 = vmatprep.subr.mxu0 0.0
    %1080 = vmatpush1.msra.mxu0 0.0
    %1081 = vmatprep.subr.mxu0 0.0
    %1082 = vmatpush1.msra.mxu0 0.0
    %1083 = vmatprep.subr.mxu0 0.0
    %1084 = vmatpush1.msra.mxu0 0.0
    %1085 = vmatprep.subr.mxu0 0.0
    %1086 = vmatpush1.msra.mxu0 0.0
    %1087 = vmatprep.subr.mxu0 0.0
    %1088 = vmatpush1.msra.mxu0 0.0
    %1089 = vmatprep.subr.mxu0 0.0
    %1090 = vmatpush1.msra.mxu0 0.0
    %1091 = vmatprep.subr.mxu0 0.0
    %1092 = vmatpush1.msra.mxu0 0.0
    %1093 = vmatprep.subr.mxu0 0.0
    %1094 = vmatpush1.msra.mxu0 0.0
    %1095 = vmatprep.subr.mxu0 0.0
    %1096 = vmatpush1.msra.mxu0 0.0
    %1097 = vmatprep.subr.mxu0 0.0
    %1098 = vmatpush1.msra.mxu0 0.0
    %1099 = vmatprep.subr.mxu0 0.0
    %1100 = vmatpush1.msra.mxu0 0.0
    %1101 = vmatprep.subr.mxu0 0.0
    %1102 = vmatpush1.msra.mxu0 0.0
    %1103 = vmatprep.subr.mxu0 0.0
    %1104 = vmatpush1.msra.mxu0 0.0
    %1105 = vmatprep.subr.mxu0 0.0
    %1106 = vmatpush1.msra.mxu0 0.0
    %1107 = vmatprep.subr.mxu0 0.0
    %1108 = vmatpush1.msra.mxu0 0.0
    %1109 = vmatprep.mubr.f32.mxu0 0.0
    %1110 = vmatmul.mubr.f32.gmra.mrb[0].mxu0 %v1040
    %v1111 = vpop.f32.mrb[0].mxu0
    %v1112 = vadd.f32 0.0, %v1111
    %v1113 = vpop.f32.mrb[0].mxu0
    %1114 = vmatprep.mubr.f32.mxu0 0.0
    %1115 = vmatmul.mubr.f32.gmra.mrb[0].mxu0 %v1043
    %v1116 = vpop.f32.mrb[0].mxu0
    %v1117 = vadd.f32 0.0, %v1116
    %v1118 = vpop.f32.mrb[0].mxu0
    %1119 = vdwg.mxu0
    %v1120 = vadd.f32 %v55, %v1112
    %v1121 = vadd.f32 %v56, %v1117
    %v1122 = vsel %vm65, %v1120, 0.0
    %1123 = vadd.xlane.f32.xlu0 %v1122
    %v1124 = vpop.xlane.xlu0 %1123
    %v1125 = vsel %vm65, %v1121, 0.0
    %1126 = vadd.xlane.f32.xlu0 %v1125
    %v1127 = vpop.xlane.xlu0 %1126
    %v1128 = vmul.f32 %v1124, %v72
    %v1129 = vmul.f32 %v1127, %v72
    %v1130 = vsub.f32 %v1120, %v1128
    %v1131 = vsub.f32 %v1121, %v1129
    %v1132 = vmul.f32 %v1130, %v1130
    %v1133 = vmul.f32 %v1131, %v1131
    %v1134 = vsel %vm65, %v1132, 0.0
    %1135 = vadd.xlane.f32.xlu0 %v1134
    %v1136 = vpop.xlane.xlu0 %1135
    %v1137 = vsel %vm65, %v1133, 0.0
    %1138 = vadd.xlane.f32.xlu0 %v1137
    %v1139 = vpop.xlane.xlu0 %1138
    %v1140 = vmul.f32 %v1136, %v72
    %v1141 = vmul.f32 %v1139, %v72
    %v1142 = vadd.f32 %v1140, 1e-06
    %v1143 = vadd.f32 %v1141, 1e-06
    %v1144 = vrsqrt.pop %v1142
    %v1145 = vrsqrt.pop %v1143
    %v1146 = vmul.f32 %v1130, %v1144
    %v1147 = vmul.f32 %v1131, %v1145
    %v1148 = vlaneseq
    %v1149 = vshrl.u32 %v1148, 7
    %v1150 = vsub.s32 0, %v1149
    %v1151 = vrot.slane %v61, %v1150
    %v1152 = vmul.f32 %v1146, %v1151
    %v1153 = vmul.f32 %v1147, %v1151
    %v1154 = vlaneseq
    %v1155 = vshrl.u32 %v1154, 7
    %v1156 = vsub.s32 0, %v1155
    %v1157 = vrot.slane %v62, %v1156
    %v1158 = vadd.f32 %v1152, %v1157
    %v1159 = vadd.f32 %v1153, %v1157
    %v1160 = vld [vmem:[%s4] sm:$0xff]
    %v1161 = vld [vmem:[%s4 + $0x8] sm:$0xff]
    %v1162 = vld [vmem:[%s4 + $0x10] sm:$0xff]
    %v1163 = vld [vmem:[%s4 + $0x18] sm:$0xff]
    %v1164 = vlaneseq
    %v1165 = vshrl.u32 %v1164, 7
    %v1166 = vsub.s32 0, %v1165
    %v1167 = vrot.slane %v63, %v1166
    %v1169 = vsel %vm65, %v1158, 0
    %v1172 = vsel %vm65, %v1159, 0
    %1174 = vmatprep.subr.mxu0 0.0
    %1175 = vmatpush1.msra.mxu0 %v1160
    %1176 = vmatprep.subr.mxu0 0.0
    %1177 = vmatpush1.msra.mxu0 %v1161
    %1178 = vmatprep.subr.mxu0 0.0
    %1179 = vmatpush1.msra.mxu0 %v1162
    %1180 = vmatprep.subr.mxu0 0.0
    %1181 = vmatpush1.msra.mxu0 %v1163
    %1182 = vmatprep.subr.mxu0 0.0
    %1183 = vmatpush1.msra.mxu0 0.0
    %1184 = vmatprep.subr.mxu0 0.0
    %1185 = vmatpush1.msra.mxu0 0.0
    %1186 = vmatprep.subr.mxu0 0.0
    %1187 = vmatpush1.msra.mxu0 0.0
    %1188 = vmatprep.subr.mxu0 0.0
    %1189 = vmatpush1.msra.mxu0 0.0
    %1190 = vmatprep.subr.mxu0 0.0
    %1191 = vmatpush1.msra.mxu0 0.0
    %1192 = vmatprep.subr.mxu0 0.0
    %1193 = vmatpush1.msra.mxu0 0.0
    %1194 = vmatprep.subr.mxu0 0.0
    %1195 = vmatpush1.msra.mxu0 0.0
    %1196 = vmatprep.subr.mxu0 0.0
    %1197 = vmatpush1.msra.mxu0 0.0
    %1198 = vmatprep.subr.mxu0 0.0
    %1199 = vmatpush1.msra.mxu0 0.0
    %1200 = vmatprep.subr.mxu0 0.0
    %1201 = vmatpush1.msra.mxu0 0.0
    %1202 = vmatprep.subr.mxu0 0.0
    %1203 = vmatpush1.msra.mxu0 0.0
    %1204 = vmatprep.subr.mxu0 0.0
    %1205 = vmatpush1.msra.mxu0 0.0
    %1206 = vmatprep.subr.mxu0 0.0
    %1207 = vmatpush1.msra.mxu0 0.0
    %1208 = vmatprep.subr.mxu0 0.0
    %1209 = vmatpush1.msra.mxu0 0.0
    %1210 = vmatprep.subr.mxu0 0.0
    %1211 = vmatpush1.msra.mxu0 0.0
    %1212 = vmatprep.subr.mxu0 0.0
    %1213 = vmatpush1.msra.mxu0 0.0
    %1214 = vmatprep.subr.mxu0 0.0
    %1215 = vmatpush1.msra.mxu0 0.0
    %1216 = vmatprep.subr.mxu0 0.0
    %1217 = vmatpush1.msra.mxu0 0.0
    %1218 = vmatprep.subr.mxu0 0.0
    %1219 = vmatpush1.msra.mxu0 0.0
    %1220 = vmatprep.subr.mxu0 0.0
    %1221 = vmatpush1.msra.mxu0 0.0
    %1222 = vmatprep.subr.mxu0 0.0
    %1223 = vmatpush1.msra.mxu0 0.0
    %1224 = vmatprep.subr.mxu0 0.0
    %1225 = vmatpush1.msra.mxu0 0.0
    %1226 = vmatprep.subr.mxu0 0.0
    %1227 = vmatpush1.msra.mxu0 0.0
    %1228 = vmatprep.subr.mxu0 0.0
    %1229 = vmatpush1.msra.mxu0 0.0
    %1230 = vmatprep.subr.mxu0 0.0
    %1231 = vmatpush1.msra.mxu0 0.0
    %1232 = vmatprep.subr.mxu0 0.0
    %1233 = vmatpush1.msra.mxu0 0.0
    %1234 = vmatprep.subr.mxu0 0.0
    %1235 = vmatpush1.msra.mxu0 0.0
    %1236 = vmatprep.subr.mxu0 0.0
    %1237 = vmatpush1.msra.mxu0 0.0
    %1238 = vmatprep.mubr.f32.mxu0 0.0
    %1239 = vmatmul.mubr.f32.gmra.mrb[0].mxu0 %v1169
    %v1240 = vpop.f32.mrb[0].mxu0
    %v1241 = vadd.f32 %v1167, %v1240
    %v1242 = vpop.f32.mrb[0].mxu0
    %1243 = vmatprep.mubr.f32.mxu0 0.0
    %1244 = vmatmul.mubr.f32.gmra.mrb[0].mxu0 %v1172
    %v1245 = vpop.f32.mrb[0].mxu0
    %v1246 = vadd.f32 %v1167, %v1245
    %v1247 = vpop.f32.mrb[0].mxu0
    %1248 = vdwg.mxu0
    %v1249 = vmax.f32 %v1241, 0.0
    %v1250 = vmax.f32 %v1246, 0.0
    %v1251 = vld [vmem:[%s5] sm:$0xff]
    %v1252 = vld [vmem:[%s5 + $0x8] sm:$0xff]
    %v1253 = vld [vmem:[%s5 + $0x10] sm:$0xff]
    %v1254 = vld [vmem:[%s5 + $0x18] sm:$0xff]
    %v1255 = vld [vmem:[%s5 + $0x20] sm:$0xff]
    %v1256 = vld [vmem:[%s5 + $0x28] sm:$0xff]
    %v1257 = vld [vmem:[%s5 + $0x30] sm:$0xff]
    %v1258 = vld [vmem:[%s5 + $0x38] sm:$0xff]
    %v1259 = vlaneseq
    %v1260 = vshrl.u32 %v1259, 7
    %v1261 = vsub.s32 0, %v1260
    %v1262 = vrot.slane %v64, %v1261
    %vm1263 = vcmask 523264
    %v1265 = vsel %vm1263, %v1249, 0
    %v1268 = vsel %vm1263, %v1250, 0
    %1270 = vmatprep.subr.mxu0 0.0
    %1271 = vmatpush1.msra.mxu0 %v1251
    %1272 = vmatprep.subr.mxu0 0.0
    %1273 = vmatpush1.msra.mxu0 %v1252
    %1274 = vmatprep.subr.mxu0 0.0
    %1275 = vmatpush1.msra.mxu0 %v1253
    %1276 = vmatprep.subr.mxu0 0.0
    %1277 = vmatpush1.msra.mxu0 %v1254
    %1278 = vmatprep.subr.mxu0 0.0
    %1279 = vmatpush1.msra.mxu0 %v1255
    %1280 = vmatprep.subr.mxu0 0.0
    %1281 = vmatpush1.msra.mxu0 %v1256
    %1282 = vmatprep.subr.mxu0 0.0
    %1283 = vmatpush1.msra.mxu0 %v1257
    %1284 = vmatprep.subr.mxu0 0.0
    %1285 = vmatpush1.msra.mxu0 %v1258
    %1286 = vmatprep.subr.mxu0 0.0
    %1287 = vmatpush1.msra.mxu0 0.0
    %1288 = vmatprep.subr.mxu0 0.0
    %1289 = vmatpush1.msra.mxu0 0.0
    %1290 = vmatprep.subr.mxu0 0.0
    %1291 = vmatpush1.msra.mxu0 0.0
    %1292 = vmatprep.subr.mxu0 0.0
    %1293 = vmatpush1.msra.mxu0 0.0
    %1294 = vmatprep.subr.mxu0 0.0
    %1295 = vmatpush1.msra.mxu0 0.0
    %1296 = vmatprep.subr.mxu0 0.0
    %1297 = vmatpush1.msra.mxu0 0.0
    %1298 = vmatprep.subr.mxu0 0.0
    %1299 = vmatpush1.msra.mxu0 0.0
    %1300 = vmatprep.subr.mxu0 0.0
    %1301 = vmatpush1.msra.mxu0 0.0
    %1302 = vmatprep.subr.mxu0 0.0
    %1303 = vmatpush1.msra.mxu0 0.0
    %1304 = vmatprep.subr.mxu0 0.0
    %1305 = vmatpush1.msra.mxu0 0.0
    %1306 = vmatprep.subr.mxu0 0.0
    %1307 = vmatpush1.msra.mxu0 0.0
    %1308 = vmatprep.subr.mxu0 0.0
    %1309 = vmatpush1.msra.mxu0 0.0
    %1310 = vmatprep.subr.mxu0 0.0
    %1311 = vmatpush1.msra.mxu0 0.0
    %1312 = vmatprep.subr.mxu0 0.0
    %1313 = vmatpush1.msra.mxu0 0.0
    %1314 = vmatprep.subr.mxu0 0.0
    %1315 = vmatpush1.msra.mxu0 0.0
    %1316 = vmatprep.subr.mxu0 0.0
    %1317 = vmatpush1.msra.mxu0 0.0
    %1318 = vmatprep.subr.mxu0 0.0
    %1319 = vmatpush1.msra.mxu0 0.0
    %1320 = vmatprep.subr.mxu0 0.0
    %1321 = vmatpush1.msra.mxu0 0.0
    %1322 = vmatprep.subr.mxu0 0.0
    %1323 = vmatpush1.msra.mxu0 0.0
    %1324 = vmatprep.subr.mxu0 0.0
    %1325 = vmatpush1.msra.mxu0 0.0
    %1326 = vmatprep.subr.mxu0 0.0
    %1327 = vmatpush1.msra.mxu0 0.0
    %1328 = vmatprep.subr.mxu0 0.0
    %1329 = vmatpush1.msra.mxu0 0.0
    %1330 = vmatprep.subr.mxu0 0.0
    %1331 = vmatpush1.msra.mxu0 0.0
    %1332 = vmatprep.subr.mxu0 0.0
    %1333 = vmatpush1.msra.mxu0 0.0
    %1334 = vmatprep.mubr.f32.mxu0 0.0
    %1335 = vmatmul.mubr.f32.gmra.mrb[0].mxu0 %v1265
    %v1336 = vpop.f32.mrb[0].mxu0
    %v1337 = vadd.f32 %v1262, %v1336
    %v1338 = vpop.f32.mrb[0].mxu0
    %1339 = vmatprep.mubr.f32.mxu0 0.0
    %1340 = vmatmul.mubr.f32.gmra.mrb[0].mxu0 %v1268
    %v1341 = vpop.f32.mrb[0].mxu0
    %v1342 = vadd.f32 %v1262, %v1341
    %v1343 = vpop.f32.mrb[0].mxu0
    %1344 = vdwg.mxu0
    %v1345 = vadd.f32 %v1120, %v1337
    %v1346 = vadd.f32 %v1121, %v1342
    %1347 = vst.msk [vmem:[#allocation7] sm:$0xff] %vm65, %v1345
    %1348 = vst.msk [vmem:[#allocation7 + $0x8] sm:$0xff] %vm65, %v1346
    // Predicated region
    $region38: #{tpu_custom_call.1} parent=1 // pred_check
      _
    $region39: #{tpu_custom_call.1} parent=1 // pred_check_branch
      %1350 = sbr.rel (0) target = $region41
    $region40: #{tpu_custom_call.1} parent=1 // pred_region
      %s1352 = ssub.s32 256, 256
      %1353 = vsyncadd [#allocation4], %s1352
      %s1354 = sshll.u32 [#allocation7], 4
      %s1355 = int_to_ptr.vmem [resolvable:$true] %s1354
      %1360 = dma.vmem_to_hbm [thread:$0]  %s1355, 256, %s7, [#allocation4], 128, 128, 8
    $region41: #{tpu_custom_call.1} parent=1 // pred_fallthru
      _
    // Predicated region
    $region42: #{tpu_custom_call.1} parent=1 // pred_check
      _
    $region43: #{tpu_custom_call.1} parent=1 // pred_check_branch
      %1362 = sbr.rel (0) target = $region45
    $region44: #{tpu_custom_call.1} parent=1 // pred_region
      %1363 = dma.done [#allocation4], 256
    $region45: #{tpu_custom_call.1} parent=1 // pred_fallthru
      _
    %1364 = vsyncpa [#allocation3], 1
    %1365 = vsyncpa [#allocation6], 1
    %1366 = vsyncpa [#allocation4], 1

</llo_original>
